<compile_context>
chip_gen: v5e
topology: v5e:2x2
jax: 0.10.0
libtpu: 0.0.40
codegen_flags: <defaults>
</compile_context>

<pallas_src>
import functools

import jax
import jax.numpy as jnp
import numpy as np
from jax.experimental import pallas as pl
from jax.experimental.pallas import tpu as pltpu


# ------------------------------ fused kernel --------------------------------

def lenet_kernel(x_ref, m1_ref, b1_ref, s1a_ref, s1b_ref,
                 m2_ref, b2_ref, s2a_ref, s2b_ref,
                 w1p_ref, fb1_ref, w2_ref, fb2_ref, w3_ref, fb3_ref,
                 out_ref, act1p_ref, *, batch, bp):
    f32 = jnp.float32
    bf16 = jnp.bfloat16
    r1 = batch * 32            # conv1 output rows, row = b*32 + oh (oh < 28 valid)
    r2 = batch * 16            # conv2 output rows, row = b*16 + oh (oh < 10 valid)

    # ---- conv1 (1->6, 5x5, VALID): 5 banded full-width (r1,32)x(32,256) dots ----
    acc1 = jnp.dot(x_ref[0:r1, :], m1_ref[0], preferred_element_type=f32)
    for di in range(1, 5):
        acc1 = acc1 + jnp.dot(x_ref[di:di + r1, :], m1_ref[di],
                              preferred_element_type=f32)
    out1 = jnp.maximum(acc1 + b1_ref[...], 0.0)           # bias + ReLU (f32)

    # ---- pool1 2x2/2: aligned lane halves + even/odd row-select dots + max ----
    pw = jnp.maximum(out1[:, 0:128], out1[:, 128:256]).astype(bf16)   # (r1, 128)
    ev = jnp.dot(s1a_ref[...], pw, preferred_element_type=f32)
    od = jnp.dot(s1b_ref[...], pw, preferred_element_type=f32)
    act1p_ref[...] = jnp.maximum(ev, od).astype(bf16)     # bf16 scratch in VMEM

    # ---- conv2 (6->16, 5x5): 5 banded (r2,128)x(128,256) dots ----
    acc2 = jnp.dot(act1p_ref[0:r2, :], m2_ref[0], preferred_element_type=f32)
    for di in range(1, 5):
        acc2 = acc2 + jnp.dot(act1p_ref[di:di + r2, :], m2_ref[di],
                              preferred_element_type=f32)
    out2 = jnp.maximum(acc2 + b2_ref[...], 0.0)

    # ---- pool2 2x2/2 ----
    pw2 = jnp.maximum(out2[:, 0:128], out2[:, 128:256]).astype(bf16)  # (r2, 128)
    ev2 = jnp.dot(s2a_ref[...], pw2, preferred_element_type=f32)
    od2 = jnp.dot(s2b_ref[...], pw2, preferred_element_type=f32)
    act2p = jnp.maximum(ev2, od2).astype(bf16)             # (5*bp, 128)

    # ---- fc1 (400 -> 120, lane-padded to 128), contraction over 5 row slabs ----
    h = jnp.dot(act2p[0:bp, :], w1p_ref[0], preferred_element_type=f32)
    for hp in range(1, 5):
        h = h + jnp.dot(act2p[bp * hp:bp * hp + bp, :], w1p_ref[hp],
                        preferred_element_type=f32)
    h1 = jnp.maximum(h + fb1_ref[...], 0.0)                # (bp, 128)

    # ---- fc2 (120 -> 84) and fc3 (84 -> 10), both lane-padded to 128 ----
    h2 = jnp.maximum(jnp.dot(h1.astype(bf16), w2_ref[...],
                             preferred_element_type=f32) + fb2_ref[...], 0.0)
    out_ref[...] = jnp.dot(h2.astype(bf16), w3_ref[...],
                           preferred_element_type=f32) + fb3_ref[...]


# ---------------------- one-time weight / constant repacking -----------------

def prepare_params(p, batch):
    """Repack PyTorch-layout LeNet params into the kernel's operand layout.

    Activation layout: row = b*BLK + h, lane = (w % 2)*128 + (w // 2)*C + c.
    """
    bf16 = jnp.bfloat16
    BP = ((batch + 7) // 8) * 8                 # sublane-padded batch
    r1, r2 = batch * 32, batch * 16
    act1_rows = ((r2 + 4 + 7) // 8) * 8         # act1p scratch rows (>= r2+4)

    w1 = np.asarray(p["conv1_w"], np.float32)   # (6, 1, 5, 5)
    b1 = np.asarray(p["conv1_b"], np.float32)
    w2 = np.asarray(p["conv2_w"], np.float32)   # (16, 6, 5, 5)
    b2 = np.asarray(p["conv2_b"], np.float32)

    # conv1 banded tap matrices: dj folded into the (32 -> 256) matrix per di.
    m1 = np.zeros((5, 32, 256), np.float32)
    for di in range(5):
        for wo in range(28):
            c0 = (wo % 2) * 128 + (wo // 2) * 6
            for dj in range(5):
                m1[di, wo + dj, c0:c0 + 6] = w1[:, 0, di, dj]
    b1l = np.zeros((1, 256), np.float32)
    b1l[0, 0:84] = np.tile(b1, 14)
    b1l[0, 128:212] = np.tile(b1, 14)

    # conv2 banded tap matrices: band occupies rows 0..83, zero elsewhere.
    m2 = np.zeros((5, 128, 256), np.float32)
    for di in range(5):
        for wo in range(10):
            c0 = (wo % 2) * 128 + (wo // 2) * 16
            for dj in range(5):
                iw = wo + dj
                m2[di, iw * 6:iw * 6 + 6, c0:c0 + 16] = w2[:, :, di, dj].T
    b2l = np.zeros((1, 256), np.float32)
    b2l[0, 0:80] = np.tile(b2, 5)
    b2l[0, 128:208] = np.tile(b2, 5)

    # pool1 row-selection (even / odd row of each pooled row pair).
    # output row b*16 + hp (hp < 14); unselected rows stay zero (required: they
    # are read by conv2's shifted slices and must not be stale).
    s1a = np.zeros((act1_rows, r1), np.float32)
    s1b = np.zeros((act1_rows, r1), np.float32)
    for b in range(batch):
        for hp in range(14):
            s1a[b * 16 + hp, b * 32 + 2 * hp] = 1.0
            s1b[b * 16 + hp, b * 32 + 2 * hp + 1] = 1.0

    # pool2 row-selection: output row hp*BP + b (hp < 5).
    s2a = np.zeros((5 * BP, r2), np.float32)
    s2b = np.zeros((5 * BP, r2), np.float32)
    for b in range(batch):
        for hp in range(5):
            s2a[hp * BP + b, b * 16 + 2 * hp] = 1.0
            s2b[hp * BP + b, b * 16 + 2 * hp + 1] = 1.0

    # fc1 weight permuted to the pooled layout (row hp, lane wp*16+co), padded
    # to (5, 128, 128); fc2/fc3 padded to full 128-lane tiles.
    w1p = np.transpose(np.asarray(p["fc1_w"], np.float32).reshape(120, 16, 5, 5),
                       (2, 3, 1, 0)).reshape(5, 80, 120)
    w1pp = np.zeros((5, 128, 128), np.float32)
    w1pp[:, 0:80, 0:120] = w1p
    fb1 = np.zeros((1, 128), np.float32)
    fb1[0, 0:120] = np.asarray(p["fc1_b"], np.float32)
    w2f = np.zeros((128, 128), np.float32)
    w2f[0:120, 0:84] = np.asarray(p["fc2_w"], np.float32).T
    fb2 = np.zeros((1, 128), np.float32)
    fb2[0, 0:84] = np.asarray(p["fc2_b"], np.float32)
    w3f = np.zeros((128, 128), np.float32)
    w3f[0:84, 0:10] = np.asarray(p["fc3_w"], np.float32).T
    fb3 = np.zeros((1, 128), np.float32)
    fb3[0, 0:10] = np.asarray(p["fc3_b"], np.float32)

    return {
        "m1": jnp.asarray(m1, bf16), "b1l": jnp.asarray(b1l),
        "s1a": jnp.asarray(s1a, bf16), "s1b": jnp.asarray(s1b, bf16),
        "m2": jnp.asarray(m2, bf16), "b2l": jnp.asarray(b2l),
        "s2a": jnp.asarray(s2a, bf16), "s2b": jnp.asarray(s2b, bf16),
        "w1p": jnp.asarray(w1pp, bf16), "fb1": jnp.asarray(fb1),
        "w2": jnp.asarray(w2f, bf16), "fb2": jnp.asarray(fb2),
        "w3": jnp.asarray(w3f, bf16), "fb3": jnp.asarray(fb3),
    }


# ------------------------------ forward wrapper ------------------------------

def lenet_forward(prepped, x):
    """x: (B, 1, 32, 32) f32 -> logits (B, 10)."""
    B = x.shape[0]
    assert prepped["s1a"].shape[1] == B * 32, "prepped params built for a different batch"
    BP = prepped["s2a"].shape[0] // 5
    act1_rows = prepped["s1a"].shape[0]
    x_rows = ((B * 32 + 4 + 7) // 8) * 8

    # Per-call glue: fold batch into rows, cast to bf16, pad slack rows for the
    # shifted conv slices (and to an 8-sublane multiple).
    x2 = jnp.pad(x.reshape(B * 32, 32).astype(jnp.bfloat16),
                 ((0, x_rows - B * 32), (0, 0)))

    operands = (x2, prepped["m1"], prepped["b1l"], prepped["s1a"], prepped["s1b"],
                prepped["m2"], prepped["b2l"], prepped["s2a"], prepped["s2b"],
                prepped["w1p"], prepped["fb1"], prepped["w2"], prepped["fb2"],
                prepped["w3"], prepped["fb3"])

    def full_spec(a):
        return pl.BlockSpec(a.shape, lambda i, _nd=a.ndim: (0,) * _nd)

    out = pl.pallas_call(
        functools.partial(lenet_kernel, batch=B, bp=BP),
        out_shape=jax.ShapeDtypeStruct((BP, 128), jnp.float32),
        grid=(1,),
        in_specs=[full_spec(a) for a in operands],
        out_specs=pl.BlockSpec((BP, 128), lambda i: (0, 0)),
        scratch_shapes=[pltpu.VMEM((act1_rows, 128), jnp.bfloat16)],
        compiler_params=pltpu.CompilerParams(
            dimension_semantics=("arbitrary",)),
    )(*operands)
    return out[:B, :10]


# ----------------------------- params / reference ----------------------------

def init_params(key):
    ks = jax.random.split(key, 10)

    def uinit(kw, kb, fan_in, shape_w, shape_b):
        s = 1.0 / float(fan_in) ** 0.5
        w = jax.random.uniform(kw, shape_w, jnp.float32, -s, s)
        b = jax.random.uniform(kb, shape_b, jnp.float32, -s, s)
        return w, b

    p = {}
    p["conv1_w"], p["conv1_b"] = uinit(ks[0], ks[1], 1 * 5 * 5, (6, 1, 5, 5), (6,))
    p["conv2_w"], p["conv2_b"] = uinit(ks[2], ks[3], 6 * 5 * 5, (16, 6, 5, 5), (16,))
    p["fc1_w"], p["fc1_b"] = uinit(ks[4], ks[5], 16 * 5 * 5, (120, 400), (120,))
    p["fc2_w"], p["fc2_b"] = uinit(ks[6], ks[7], 120, (84, 120), (84,))
    p["fc3_w"], p["fc3_b"] = uinit(ks[8], ks[9], 84, (10, 84), (10,))
    return p


def reference_forward(params, x):
    hi = jax.lax.Precision.HIGHEST

    def conv(x, w, b):
        y = jax.lax.conv_general_dilated(
            x, w, window_strides=(1, 1), padding="VALID",
            dimension_numbers=("NCHW", "OIHW", "NCHW"), precision=hi)
        return y + b[None, :, None, None]

    def pool(x):
        return jax.lax.reduce_window(
            x, -jnp.inf, jax.lax.max, (1, 1, 2, 2), (1, 1, 2, 2), "VALID")

    x = jax.nn.relu(conv(x, params["conv1_w"], params["conv1_b"]))
    x = pool(x)
    x = jax.nn.relu(conv(x, params["conv2_w"], params["conv2_b"]))
    x = pool(x)
    x = x.reshape(x.shape[0], -1)
    x = jax.nn.relu(jnp.dot(x, params["fc1_w"].T, precision=hi) + params["fc1_b"])
    x = jax.nn.relu(jnp.dot(x, params["fc2_w"].T, precision=hi) + params["fc2_b"])
    x = jnp.dot(x, params["fc3_w"].T, precision=hi) + params["fc3_b"]
    return x


if __name__ == "__main__":
    key = jax.random.PRNGKey(0)
    pkey, xkey = jax.random.split(key)
    params = init_params(pkey)
    # LeNet's fc1 (16*5*5 inputs) implies 1x32x32 inputs; small batch = 2.
    x = jax.random.normal(xkey, (2, 1, 32, 32), jnp.float32)

    prepped = prepare_params(params, batch=2)   # one-time weight/constant repack
    fwd = jax.jit(lenet_forward)
    out = jax.block_until_ready(fwd(prepped, x))

    ref = reference_forward(params, x)
    assert out.shape == (2, 10), out.shape
    max_err = float(jnp.max(jnp.abs(out - ref)))
    assert jnp.allclose(out, ref, atol=2e-2, rtol=2e-2), max_err
    print("KERNEL_OK")
</pallas_src>

<mosaic_0001>
module attributes {stable_mosaic.version = 11 : i64} {
  func.func @lenet_kernel(%arg0: i32, %arg1: memref<72x32xbf16, #tpu.memory_space<vmem>>, %arg2: memref<5x32x256xbf16, #tpu.memory_space<vmem>>, %arg3: memref<1x256xf32, #tpu.memory_space<vmem>>, %arg4: memref<40x64xbf16, #tpu.memory_space<vmem>>, %arg5: memref<40x64xbf16, #tpu.memory_space<vmem>>, %arg6: memref<5x128x256xbf16, #tpu.memory_space<vmem>>, %arg7: memref<1x256xf32, #tpu.memory_space<vmem>>, %arg8: memref<40x32xbf16, #tpu.memory_space<vmem>>, %arg9: memref<40x32xbf16, #tpu.memory_space<vmem>>, %arg10: memref<5x128x128xbf16, #tpu.memory_space<vmem>>, %arg11: memref<1x128xf32, #tpu.memory_space<vmem>>, %arg12: memref<128x128xbf16, #tpu.memory_space<vmem>>, %arg13: memref<1x128xf32, #tpu.memory_space<vmem>>, %arg14: memref<128x128xbf16, #tpu.memory_space<vmem>>, %arg15: memref<1x128xf32, #tpu.memory_space<vmem>>, %arg16: memref<8x128xf32, #tpu.memory_space<vmem>>, %arg17: memref<40x128xbf16, #tpu.memory_space<vmem>>) attributes {dimension_semantics = [#tpu.dimension_semantics<arbitrary>], iteration_bounds = array<i64: 1>, scalar_prefetch = 0 : i64, scratch_operands = 1 : i64, tpu.core_type = #tpu.core_type<tc>, window_params = [{pipeline_mode = #tpu.pipeline_mode<synchronous>, transform_indices = @transform_0, window_bounds = array<i64: 72, 32>}, {pipeline_mode = #tpu.pipeline_mode<synchronous>, transform_indices = @transform_1, window_bounds = array<i64: 5, 32, 256>}, {pipeline_mode = #tpu.pipeline_mode<synchronous>, transform_indices = @transform_2, window_bounds = array<i64: 1, 256>}, {pipeline_mode = #tpu.pipeline_mode<synchronous>, transform_indices = @transform_3, window_bounds = array<i64: 40, 64>}, {pipeline_mode = #tpu.pipeline_mode<synchronous>, transform_indices = @transform_4, window_bounds = array<i64: 40, 64>}, {pipeline_mode = #tpu.pipeline_mode<synchronous>, transform_indices = @transform_5, window_bounds = array<i64: 5, 128, 256>}, {pipeline_mode = #tpu.pipeline_mode<synchronous>, transform_indices = @transform_6, window_bounds = array<i64: 1, 256>}, {pipeline_mode = #tpu.pipeline_mode<synchronous>, transform_indices = @transform_7, window_bounds = array<i64: 40, 32>}, {pipeline_mode = #tpu.pipeline_mode<synchronous>, transform_indices = @transform_8, window_bounds = array<i64: 40, 32>}, {pipeline_mode = #tpu.pipeline_mode<synchronous>, transform_indices = @transform_9, window_bounds = array<i64: 5, 128, 128>}, {pipeline_mode = #tpu.pipeline_mode<synchronous>, transform_indices = @transform_10, window_bounds = array<i64: 1, 128>}, {pipeline_mode = #tpu.pipeline_mode<synchronous>, transform_indices = @transform_11, window_bounds = array<i64: 128, 128>}, {pipeline_mode = #tpu.pipeline_mode<synchronous>, transform_indices = @transform_12, window_bounds = array<i64: 1, 128>}, {pipeline_mode = #tpu.pipeline_mode<synchronous>, transform_indices = @transform_13, window_bounds = array<i64: 128, 128>}, {pipeline_mode = #tpu.pipeline_mode<synchronous>, transform_indices = @transform_14, window_bounds = array<i64: 1, 128>}, {pipeline_mode = #tpu.pipeline_mode<synchronous>, transform_indices = @transform_15, window_bounds = array<i64: 8, 128>}]} {
    %c0 = arith.constant 0 : index
    %c0_0 = arith.constant 0 : index
    %0 = vector.load %arg1[%c0, %c0_0] : memref<72x32xbf16, #tpu.memory_space<vmem>>, vector<64x32xbf16>
    %c0_1 = arith.constant 0 : index
    %c0_2 = arith.constant 0 : index
    %c0_3 = arith.constant 0 : index
    %1 = vector.load %arg2[%c0_1, %c0_2, %c0_3] : memref<5x32x256xbf16, #tpu.memory_space<vmem>>, vector<1x32x256xbf16>
    %2 = vector.shape_cast %1 : vector<1x32x256xbf16> to vector<32x256xbf16>
    %cst = arith.constant dense<0.000000e+00> : vector<64x256xf32>
    %3 = tpu.matmul %0, %2, %cst {dimension_numbers = #tpu.dot_dimension_numbers<[1], [0], [0], [1], [0, 0, 1, 1], [], []>} : vector<64x32xbf16>, vector<32x256xbf16>, vector<64x256xf32> -> vector<64x256xf32>
    %c1 = arith.constant 1 : index
    %c0_4 = arith.constant 0 : index
    %4 = vector.load %arg1[%c1, %c0_4] : memref<72x32xbf16, #tpu.memory_space<vmem>>, vector<64x32xbf16>
    %c1_5 = arith.constant 1 : index
    %c0_6 = arith.constant 0 : index
    %c0_7 = arith.constant 0 : index
    %5 = vector.load %arg2[%c1_5, %c0_6, %c0_7] : memref<5x32x256xbf16, #tpu.memory_space<vmem>>, vector<1x32x256xbf16>
    %6 = vector.shape_cast %5 : vector<1x32x256xbf16> to vector<32x256xbf16>
    %cst_8 = arith.constant dense<0.000000e+00> : vector<64x256xf32>
    %7 = tpu.matmul %4, %6, %cst_8 {dimension_numbers = #tpu.dot_dimension_numbers<[1], [0], [0], [1], [0, 0, 1, 1], [], []>} : vector<64x32xbf16>, vector<32x256xbf16>, vector<64x256xf32> -> vector<64x256xf32>
    %8 = arith.addf %3, %7 : vector<64x256xf32>
    %c2 = arith.constant 2 : index
    %c0_9 = arith.constant 0 : index
    %9 = vector.load %arg1[%c2, %c0_9] : memref<72x32xbf16, #tpu.memory_space<vmem>>, vector<64x32xbf16>
    %c2_10 = arith.constant 2 : index
    %c0_11 = arith.constant 0 : index
    %c0_12 = arith.constant 0 : index
    %10 = vector.load %arg2[%c2_10, %c0_11, %c0_12] : memref<5x32x256xbf16, #tpu.memory_space<vmem>>, vector<1x32x256xbf16>
    %11 = vector.shape_cast %10 : vector<1x32x256xbf16> to vector<32x256xbf16>
    %cst_13 = arith.constant dense<0.000000e+00> : vector<64x256xf32>
    %12 = tpu.matmul %9, %11, %cst_13 {dimension_numbers = #tpu.dot_dimension_numbers<[1], [0], [0], [1], [0, 0, 1, 1], [], []>} : vector<64x32xbf16>, vector<32x256xbf16>, vector<64x256xf32> -> vector<64x256xf32>
    %13 = arith.addf %8, %12 : vector<64x256xf32>
    %c3 = arith.constant 3 : index
    %c0_14 = arith.constant 0 : index
    %14 = vector.load %arg1[%c3, %c0_14] : memref<72x32xbf16, #tpu.memory_space<vmem>>, vector<64x32xbf16>
    %c3_15 = arith.constant 3 : index
    %c0_16 = arith.constant 0 : index
    %c0_17 = arith.constant 0 : index
    %15 = vector.load %arg2[%c3_15, %c0_16, %c0_17] : memref<5x32x256xbf16, #tpu.memory_space<vmem>>, vector<1x32x256xbf16>
    %16 = vector.shape_cast %15 : vector<1x32x256xbf16> to vector<32x256xbf16>
    %cst_18 = arith.constant dense<0.000000e+00> : vector<64x256xf32>
    %17 = tpu.matmul %14, %16, %cst_18 {dimension_numbers = #tpu.dot_dimension_numbers<[1], [0], [0], [1], [0, 0, 1, 1], [], []>} : vector<64x32xbf16>, vector<32x256xbf16>, vector<64x256xf32> -> vector<64x256xf32>
    %18 = arith.addf %13, %17 : vector<64x256xf32>
    %c4 = arith.constant 4 : index
    %c0_19 = arith.constant 0 : index
    %19 = vector.load %arg1[%c4, %c0_19] : memref<72x32xbf16, #tpu.memory_space<vmem>>, vector<64x32xbf16>
    %c4_20 = arith.constant 4 : index
    %c0_21 = arith.constant 0 : index
    %c0_22 = arith.constant 0 : index
    %20 = vector.load %arg2[%c4_20, %c0_21, %c0_22] : memref<5x32x256xbf16, #tpu.memory_space<vmem>>, vector<1x32x256xbf16>
    %21 = vector.shape_cast %20 : vector<1x32x256xbf16> to vector<32x256xbf16>
    %cst_23 = arith.constant dense<0.000000e+00> : vector<64x256xf32>
    %22 = tpu.matmul %19, %21, %cst_23 {dimension_numbers = #tpu.dot_dimension_numbers<[1], [0], [0], [1], [0, 0, 1, 1], [], []>} : vector<64x32xbf16>, vector<32x256xbf16>, vector<64x256xf32> -> vector<64x256xf32>
    %23 = arith.addf %18, %22 : vector<64x256xf32>
    %c0_24 = arith.constant 0 : index
    %c0_25 = arith.constant 0 : index
    %24 = vector.load %arg3[%c0_24, %c0_25] : memref<1x256xf32, #tpu.memory_space<vmem>>, vector<1x256xf32>
    %25 = vector.broadcast %24 : vector<1x256xf32> to vector<64x256xf32>
    %26 = arith.addf %23, %25 : vector<64x256xf32>
    %cst_26 = arith.constant 0.000000e+00 : f32
    %27 = vector.broadcast %cst_26 : f32 to vector<64x256xf32>
    %28 = arith.maximumf %26, %27 : vector<64x256xf32>
    %29 = vector.extract_strided_slice %28 {offsets = [0, 0], sizes = [64, 128], strides = [1, 1]} : vector<64x256xf32> to vector<64x128xf32>
    %30 = vector.extract_strided_slice %28 {offsets = [0, 128], sizes = [64, 128], strides = [1, 1]} : vector<64x256xf32> to vector<64x128xf32>
    %31 = arith.maximumf %29, %30 : vector<64x128xf32>
    %32 = arith.truncf %31 : vector<64x128xf32> to vector<64x128xbf16>
    %c0_27 = arith.constant 0 : index
    %c0_28 = arith.constant 0 : index
    %33 = vector.load %arg4[%c0_27, %c0_28] : memref<40x64xbf16, #tpu.memory_space<vmem>>, vector<40x64xbf16>
    %cst_29 = arith.constant dense<0.000000e+00> : vector<40x128xf32>
    %34 = tpu.matmul %33, %32, %cst_29 {dimension_numbers = #tpu.dot_dimension_numbers<[1], [0], [0], [1], [0, 0, 1, 1], [], []>} : vector<40x64xbf16>, vector<64x128xbf16>, vector<40x128xf32> -> vector<40x128xf32>
    %c0_30 = arith.constant 0 : index
    %c0_31 = arith.constant 0 : index
    %35 = vector.load %arg5[%c0_30, %c0_31] : memref<40x64xbf16, #tpu.memory_space<vmem>>, vector<40x64xbf16>
    %cst_32 = arith.constant dense<0.000000e+00> : vector<40x128xf32>
    %36 = tpu.matmul %35, %32, %cst_32 {dimension_numbers = #tpu.dot_dimension_numbers<[1], [0], [0], [1], [0, 0, 1, 1], [], []>} : vector<40x64xbf16>, vector<64x128xbf16>, vector<40x128xf32> -> vector<40x128xf32>
    %37 = arith.maximumf %34, %36 : vector<40x128xf32>
    %38 = arith.truncf %37 : vector<40x128xf32> to vector<40x128xbf16>
    %c0_33 = arith.constant 0 : index
    %c0_34 = arith.constant 0 : index
    %39 = vector.load %arg17[%c0_33, %c0_34] : memref<40x128xbf16, #tpu.memory_space<vmem>>, vector<40x128xbf16>
    tpu.vector_store %arg17[%c0_33, %c0_34], %38 {strides = array<i32>} : memref<40x128xbf16, #tpu.memory_space<vmem>>, vector<40x128xbf16>,
    %c0_35 = arith.constant 0 : index
    %c0_36 = arith.constant 0 : index
    %40 = vector.load %arg17[%c0_35, %c0_36] : memref<40x128xbf16, #tpu.memory_space<vmem>>, vector<32x128xbf16>
    %c0_37 = arith.constant 0 : index
    %c0_38 = arith.constant 0 : index
    %c0_39 = arith.constant 0 : index
    %41 = vector.load %arg6[%c0_37, %c0_38, %c0_39] : memref<5x128x256xbf16, #tpu.memory_space<vmem>>, vector<1x128x256xbf16>
    %42 = vector.shape_cast %41 : vector<1x128x256xbf16> to vector<128x256xbf16>
    %cst_40 = arith.constant dense<0.000000e+00> : vector<32x256xf32>
    %43 = tpu.matmul %40, %42, %cst_40 {dimension_numbers = #tpu.dot_dimension_numbers<[1], [0], [0], [1], [0, 0, 1, 1], [], []>} : vector<32x128xbf16>, vector<128x256xbf16>, vector<32x256xf32> -> vector<32x256xf32>
    %c1_41 = arith.constant 1 : index
    %c0_42 = arith.constant 0 : index
    %44 = vector.load %arg17[%c1_41, %c0_42] : memref<40x128xbf16, #tpu.memory_space<vmem>>, vector<32x128xbf16>
    %c1_43 = arith.constant 1 : index
    %c0_44 = arith.constant 0 : index
    %c0_45 = arith.constant 0 : index
    %45 = vector.load %arg6[%c1_43, %c0_44, %c0_45] : memref<5x128x256xbf16, #tpu.memory_space<vmem>>, vector<1x128x256xbf16>
    %46 = vector.shape_cast %45 : vector<1x128x256xbf16> to vector<128x256xbf16>
    %cst_46 = arith.constant dense<0.000000e+00> : vector<32x256xf32>
    %47 = tpu.matmul %44, %46, %cst_46 {dimension_numbers = #tpu.dot_dimension_numbers<[1], [0], [0], [1], [0, 0, 1, 1], [], []>} : vector<32x128xbf16>, vector<128x256xbf16>, vector<32x256xf32> -> vector<32x256xf32>
    %48 = arith.addf %43, %47 : vector<32x256xf32>
    %c2_47 = arith.constant 2 : index
    %c0_48 = arith.constant 0 : index
    %49 = vector.load %arg17[%c2_47, %c0_48] : memref<40x128xbf16, #tpu.memory_space<vmem>>, vector<32x128xbf16>
    %c2_49 = arith.constant 2 : index
    %c0_50 = arith.constant 0 : index
    %c0_51 = arith.constant 0 : index
    %50 = vector.load %arg6[%c2_49, %c0_50, %c0_51] : memref<5x128x256xbf16, #tpu.memory_space<vmem>>, vector<1x128x256xbf16>
    %51 = vector.shape_cast %50 : vector<1x128x256xbf16> to vector<128x256xbf16>
    %cst_52 = arith.constant dense<0.000000e+00> : vector<32x256xf32>
    %52 = tpu.matmul %49, %51, %cst_52 {dimension_numbers = #tpu.dot_dimension_numbers<[1], [0], [0], [1], [0, 0, 1, 1], [], []>} : vector<32x128xbf16>, vector<128x256xbf16>, vector<32x256xf32> -> vector<32x256xf32>
    %53 = arith.addf %48, %52 : vector<32x256xf32>
    %c3_53 = arith.constant 3 : index
    %c0_54 = arith.constant 0 : index
    %54 = vector.load %arg17[%c3_53, %c0_54] : memref<40x128xbf16, #tpu.memory_space<vmem>>, vector<32x128xbf16>
    %c3_55 = arith.constant 3 : index
    %c0_56 = arith.constant 0 : index
    %c0_57 = arith.constant 0 : index
    %55 = vector.load %arg6[%c3_55, %c0_56, %c0_57] : memref<5x128x256xbf16, #tpu.memory_space<vmem>>, vector<1x128x256xbf16>
    %56 = vector.shape_cast %55 : vector<1x128x256xbf16> to vector<128x256xbf16>
    %cst_58 = arith.constant dense<0.000000e+00> : vector<32x256xf32>
    %57 = tpu.matmul %54, %56, %cst_58 {dimension_numbers = #tpu.dot_dimension_numbers<[1], [0], [0], [1], [0, 0, 1, 1], [], []>} : vector<32x128xbf16>, vector<128x256xbf16>, vector<32x256xf32> -> vector<32x256xf32>
    %58 = arith.addf %53, %57 : vector<32x256xf32>
    %c4_59 = arith.constant 4 : index
    %c0_60 = arith.constant 0 : index
    %59 = vector.load %arg17[%c4_59, %c0_60] : memref<40x128xbf16, #tpu.memory_space<vmem>>, vector<32x128xbf16>
    %c4_61 = arith.constant 4 : index
    %c0_62 = arith.constant 0 : index
    %c0_63 = arith.constant 0 : index
    %60 = vector.load %arg6[%c4_61, %c0_62, %c0_63] : memref<5x128x256xbf16, #tpu.memory_space<vmem>>, vector<1x128x256xbf16>
    %61 = vector.shape_cast %60 : vector<1x128x256xbf16> to vector<128x256xbf16>
    %cst_64 = arith.constant dense<0.000000e+00> : vector<32x256xf32>
    %62 = tpu.matmul %59, %61, %cst_64 {dimension_numbers = #tpu.dot_dimension_numbers<[1], [0], [0], [1], [0, 0, 1, 1], [], []>} : vector<32x128xbf16>, vector<128x256xbf16>, vector<32x256xf32> -> vector<32x256xf32>
    %63 = arith.addf %58, %62 : vector<32x256xf32>
    %c0_65 = arith.constant 0 : index
    %c0_66 = arith.constant 0 : index
    %64 = vector.load %arg7[%c0_65, %c0_66] : memref<1x256xf32, #tpu.memory_space<vmem>>, vector<1x256xf32>
    %65 = vector.broadcast %64 : vector<1x256xf32> to vector<32x256xf32>
    %66 = arith.addf %63, %65 : vector<32x256xf32>
    %cst_67 = arith.constant 0.000000e+00 : f32
    %67 = vector.broadcast %cst_67 : f32 to vector<32x256xf32>
    %68 = arith.maximumf %66, %67 : vector<32x256xf32>
    %69 = vector.extract_strided_slice %68 {offsets = [0, 0], sizes = [32, 128], strides = [1, 1]} : vector<32x256xf32> to vector<32x128xf32>
    %70 = vector.extract_strided_slice %68 {offsets = [0, 128], sizes = [32, 128], strides = [1, 1]} : vector<32x256xf32> to vector<32x128xf32>
    %71 = arith.maximumf %69, %70 : vector<32x128xf32>
    %72 = arith.truncf %71 : vector<32x128xf32> to vector<32x128xbf16>
    %c0_68 = arith.constant 0 : index
    %c0_69 = arith.constant 0 : index
    %73 = vector.load %arg8[%c0_68, %c0_69] : memref<40x32xbf16, #tpu.memory_space<vmem>>, vector<40x32xbf16>
    %cst_70 = arith.constant dense<0.000000e+00> : vector<40x128xf32>
    %74 = tpu.matmul %73, %72, %cst_70 {dimension_numbers = #tpu.dot_dimension_numbers<[1], [0], [0], [1], [0, 0, 1, 1], [], []>} : vector<40x32xbf16>, vector<32x128xbf16>, vector<40x128xf32> -> vector<40x128xf32>
    %c0_71 = arith.constant 0 : index
    %c0_72 = arith.constant 0 : index
    %75 = vector.load %arg9[%c0_71, %c0_72] : memref<40x32xbf16, #tpu.memory_space<vmem>>, vector<40x32xbf16>
    %cst_73 = arith.constant dense<0.000000e+00> : vector<40x128xf32>
    %76 = tpu.matmul %75, %72, %cst_73 {dimension_numbers = #tpu.dot_dimension_numbers<[1], [0], [0], [1], [0, 0, 1, 1], [], []>} : vector<40x32xbf16>, vector<32x128xbf16>, vector<40x128xf32> -> vector<40x128xf32>
    %77 = arith.maximumf %74, %76 : vector<40x128xf32>
    %78 = arith.truncf %77 : vector<40x128xf32> to vector<40x128xbf16>
    %79 = vector.extract_strided_slice %78 {offsets = [0, 0], sizes = [8, 128], strides = [1, 1]} : vector<40x128xbf16> to vector<8x128xbf16>
    %c0_74 = arith.constant 0 : index
    %c0_75 = arith.constant 0 : index
    %c0_76 = arith.constant 0 : index
    %80 = vector.load %arg10[%c0_74, %c0_75, %c0_76] : memref<5x128x128xbf16, #tpu.memory_space<vmem>>, vector<1x128x128xbf16>
    %81 = vector.shape_cast %80 : vector<1x128x128xbf16> to vector<128x128xbf16>
    %cst_77 = arith.constant dense<0.000000e+00> : vector<8x128xf32>
    %82 = tpu.matmul %79, %81, %cst_77 {dimension_numbers = #tpu.dot_dimension_numbers<[1], [0], [0], [1], [0, 0, 1, 1], [], []>} : vector<8x128xbf16>, vector<128x128xbf16>, vector<8x128xf32> -> vector<8x128xf32>
    %83 = vector.extract_strided_slice %78 {offsets = [8, 0], sizes = [8, 128], strides = [1, 1]} : vector<40x128xbf16> to vector<8x128xbf16>
    %c1_78 = arith.constant 1 : index
    %c0_79 = arith.constant 0 : index
    %c0_80 = arith.constant 0 : index
    %84 = vector.load %arg10[%c1_78, %c0_79, %c0_80] : memref<5x128x128xbf16, #tpu.memory_space<vmem>>, vector<1x128x128xbf16>
    %85 = vector.shape_cast %84 : vector<1x128x128xbf16> to vector<128x128xbf16>
    %cst_81 = arith.constant dense<0.000000e+00> : vector<8x128xf32>
    %86 = tpu.matmul %83, %85, %cst_81 {dimension_numbers = #tpu.dot_dimension_numbers<[1], [0], [0], [1], [0, 0, 1, 1], [], []>} : vector<8x128xbf16>, vector<128x128xbf16>, vector<8x128xf32> -> vector<8x128xf32>
    %87 = arith.addf %82, %86 : vector<8x128xf32>
    %88 = vector.extract_strided_slice %78 {offsets = [16, 0], sizes = [8, 128], strides = [1, 1]} : vector<40x128xbf16> to vector<8x128xbf16>
    %c2_82 = arith.constant 2 : index
    %c0_83 = arith.constant 0 : index
    %c0_84 = arith.constant 0 : index
    %89 = vector.load %arg10[%c2_82, %c0_83, %c0_84] : memref<5x128x128xbf16, #tpu.memory_space<vmem>>, vector<1x128x128xbf16>
    %90 = vector.shape_cast %89 : vector<1x128x128xbf16> to vector<128x128xbf16>
    %cst_85 = arith.constant dense<0.000000e+00> : vector<8x128xf32>
    %91 = tpu.matmul %88, %90, %cst_85 {dimension_numbers = #tpu.dot_dimension_numbers<[1], [0], [0], [1], [0, 0, 1, 1], [], []>} : vector<8x128xbf16>, vector<128x128xbf16>, vector<8x128xf32> -> vector<8x128xf32>
    %92 = arith.addf %87, %91 : vector<8x128xf32>
    %93 = vector.extract_strided_slice %78 {offsets = [24, 0], sizes = [8, 128], strides = [1, 1]} : vector<40x128xbf16> to vector<8x128xbf16>
    %c3_86 = arith.constant 3 : index
    %c0_87 = arith.constant 0 : index
    %c0_88 = arith.constant 0 : index
    %94 = vector.load %arg10[%c3_86, %c0_87, %c0_88] : memref<5x128x128xbf16, #tpu.memory_space<vmem>>, vector<1x128x128xbf16>
    %95 = vector.shape_cast %94 : vector<1x128x128xbf16> to vector<128x128xbf16>
    %cst_89 = arith.constant dense<0.000000e+00> : vector<8x128xf32>
    %96 = tpu.matmul %93, %95, %cst_89 {dimension_numbers = #tpu.dot_dimension_numbers<[1], [0], [0], [1], [0, 0, 1, 1], [], []>} : vector<8x128xbf16>, vector<128x128xbf16>, vector<8x128xf32> -> vector<8x128xf32>
    %97 = arith.addf %92, %96 : vector<8x128xf32>
    %98 = vector.extract_strided_slice %78 {offsets = [32, 0], sizes = [8, 128], strides = [1, 1]} : vector<40x128xbf16> to vector<8x128xbf16>
    %c4_90 = arith.constant 4 : index
    %c0_91 = arith.constant 0 : index
    %c0_92 = arith.constant 0 : index
    %99 = vector.load %arg10[%c4_90, %c0_91, %c0_92] : memref<5x128x128xbf16, #tpu.memory_space<vmem>>, vector<1x128x128xbf16>
    %100 = vector.shape_cast %99 : vector<1x128x128xbf16> to vector<128x128xbf16>
    %cst_93 = arith.constant dense<0.000000e+00> : vector<8x128xf32>
    %101 = tpu.matmul %98, %100, %cst_93 {dimension_numbers = #tpu.dot_dimension_numbers<[1], [0], [0], [1], [0, 0, 1, 1], [], []>} : vector<8x128xbf16>, vector<128x128xbf16>, vector<8x128xf32> -> vector<8x128xf32>
    %102 = arith.addf %97, %101 : vector<8x128xf32>
    %c0_94 = arith.constant 0 : index
    %c0_95 = arith.constant 0 : index
    %103 = vector.load %arg11[%c0_94, %c0_95] : memref<1x128xf32, #tpu.memory_space<vmem>>, vector<1x128xf32>
    %104 = vector.broadcast %103 : vector<1x128xf32> to vector<8x128xf32>
    %105 = arith.addf %102, %104 : vector<8x128xf32>
    %cst_96 = arith.constant 0.000000e+00 : f32
    %106 = vector.broadcast %cst_96 : f32 to vector<8x128xf32>
    %107 = arith.maximumf %105, %106 : vector<8x128xf32>
    %108 = arith.truncf %107 : vector<8x128xf32> to vector<8x128xbf16>
    %c0_97 = arith.constant 0 : index
    %c0_98 = arith.constant 0 : index
    %109 = vector.load %arg12[%c0_97, %c0_98] : memref<128x128xbf16, #tpu.memory_space<vmem>>, vector<128x128xbf16>
    %cst_99 = arith.constant dense<0.000000e+00> : vector<8x128xf32>
    %110 = tpu.matmul %108, %109, %cst_99 {dimension_numbers = #tpu.dot_dimension_numbers<[1], [0], [0], [1], [0, 0, 1, 1], [], []>} : vector<8x128xbf16>, vector<128x128xbf16>, vector<8x128xf32> -> vector<8x128xf32>
    %c0_100 = arith.constant 0 : index
    %c0_101 = arith.constant 0 : index
    %111 = vector.load %arg13[%c0_100, %c0_101] : memref<1x128xf32, #tpu.memory_space<vmem>>, vector<1x128xf32>
    %112 = vector.broadcast %111 : vector<1x128xf32> to vector<8x128xf32>
    %113 = arith.addf %110, %112 : vector<8x128xf32>
    %cst_102 = arith.constant 0.000000e+00 : f32
    %114 = vector.broadcast %cst_102 : f32 to vector<8x128xf32>
    %115 = arith.maximumf %113, %114 : vector<8x128xf32>
    %116 = arith.truncf %115 : vector<8x128xf32> to vector<8x128xbf16>
    %c0_103 = arith.constant 0 : index
    %c0_104 = arith.constant 0 : index
    %117 = vector.load %arg14[%c0_103, %c0_104] : memref<128x128xbf16, #tpu.memory_space<vmem>>, vector<128x128xbf16>
    %cst_105 = arith.constant dense<0.000000e+00> : vector<8x128xf32>
    %118 = tpu.matmul %116, %117, %cst_105 {dimension_numbers = #tpu.dot_dimension_numbers<[1], [0], [0], [1], [0, 0, 1, 1], [], []>} : vector<8x128xbf16>, vector<128x128xbf16>, vector<8x128xf32> -> vector<8x128xf32>
    %c0_106 = arith.constant 0 : index
    %c0_107 = arith.constant 0 : index
    %119 = vector.load %arg15[%c0_106, %c0_107] : memref<1x128xf32, #tpu.memory_space<vmem>>, vector<1x128xf32>
    %120 = vector.broadcast %119 : vector<1x128xf32> to vector<8x128xf32>
    %121 = arith.addf %118, %120 : vector<8x128xf32>
    %c0_108 = arith.constant 0 : index
    %c0_109 = arith.constant 0 : index
    %122 = vector.load %arg16[%c0_108, %c0_109] : memref<8x128xf32, #tpu.memory_space<vmem>>, vector<8x128xf32>
    tpu.vector_store %arg16[%c0_108, %c0_109], %121 {strides = array<i32>} : memref<8x128xf32, #tpu.memory_space<vmem>>, vector<8x128xf32>,
    return
  }
  func.func @transform_0(%arg0: i32) -> (i32, i32) {
    %c0_i32 = arith.constant 0 : i32
    %c0_i32_0 = arith.constant 0 : i32
    %c0_i32_1 = arith.constant 0 : i32
    return %c0_i32, %c0_i32_0 : i32, i32
  }
  func.func @transform_1(%arg0: i32) -> (i32, i32, i32) {
    %c0_i32 = arith.constant 0 : i32
    %c0_i32_0 = arith.constant 0 : i32
    %c0_i32_1 = arith.constant 0 : i32
    %c0_i32_2 = arith.constant 0 : i32
    return %c0_i32, %c0_i32_0, %c0_i32_1 : i32, i32, i32
  }
  func.func @transform_2(%arg0: i32) -> (i32, i32) {
    %c0_i32 = arith.constant 0 : i32
    %c0_i32_0 = arith.constant 0 : i32
    %c0_i32_1 = arith.constant 0 : i32
    return %c0_i32, %c0_i32_0 : i32, i32
  }
  func.func @transform_3(%arg0: i32) -> (i32, i32) {
    %c0_i32 = arith.constant 0 : i32
    %c0_i32_0 = arith.constant 0 : i32
    %c0_i32_1 = arith.constant 0 : i32
    return %c0_i32, %c0_i32_0 : i32, i32
  }
  func.func @transform_4(%arg0: i32) -> (i32, i32) {
    %c0_i32 = arith.constant 0 : i32
    %c0_i32_0 = arith.constant 0 : i32
    %c0_i32_1 = arith.constant 0 : i32
    return %c0_i32, %c0_i32_0 : i32, i32
  }
  func.func @transform_5(%arg0: i32) -> (i32, i32, i32) {
    %c0_i32 = arith.constant 0 : i32
    %c0_i32_0 = arith.constant 0 : i32
    %c0_i32_1 = arith.constant 0 : i32
    %c0_i32_2 = arith.constant 0 : i32
    return %c0_i32, %c0_i32_0, %c0_i32_1 : i32, i32, i32
  }
  func.func @transform_6(%arg0: i32) -> (i32, i32) {
    %c0_i32 = arith.constant 0 : i32
    %c0_i32_0 = arith.constant 0 : i32
    %c0_i32_1 = arith.constant 0 : i32
    return %c0_i32, %c0_i32_0 : i32, i32
  }
  func.func @transform_7(%arg0: i32) -> (i32, i32) {
    %c0_i32 = arith.constant 0 : i32
    %c0_i32_0 = arith.constant 0 : i32
    %c0_i32_1 = arith.constant 0 : i32
    return %c0_i32, %c0_i32_0 : i32, i32
  }
  func.func @transform_8(%arg0: i32) -> (i32, i32) {
    %c0_i32 = arith.constant 0 : i32
    %c0_i32_0 = arith.constant 0 : i32
    %c0_i32_1 = arith.constant 0 : i32
    return %c0_i32, %c0_i32_0 : i32, i32
  }
  func.func @transform_9(%arg0: i32) -> (i32, i32, i32) {
    %c0_i32 = arith.constant 0 : i32
    %c0_i32_0 = arith.constant 0 : i32
    %c0_i32_1 = arith.constant 0 : i32
    %c0_i32_2 = arith.constant 0 : i32
    return %c0_i32, %c0_i32_0, %c0_i32_1 : i32, i32, i32
  }
  func.func @transform_10(%arg0: i32) -> (i32, i32) {
    %c0_i32 = arith.constant 0 : i32
    %c0_i32_0 = arith.constant 0 : i32
    %c0_i32_1 = arith.constant 0 : i32
    return %c0_i32, %c0_i32_0 : i32, i32
  }
  func.func @transform_11(%arg0: i32) -> (i32, i32) {
    %c0_i32 = arith.constant 0 : i32
    %c0_i32_0 = arith.constant 0 : i32
    %c0_i32_1 = arith.constant 0 : i32
    return %c0_i32, %c0_i32_0 : i32, i32
  }
  func.func @transform_12(%arg0: i32) -> (i32, i32) {
    %c0_i32 = arith.constant 0 : i32
    %c0_i32_0 = arith.constant 0 : i32
    %c0_i32_1 = arith.constant 0 : i32
    return %c0_i32, %c0_i32_0 : i32, i32
  }
  func.func @transform_13(%arg0: i32) -> (i32, i32) {
    %c0_i32 = arith.constant 0 : i32
    %c0_i32_0 = arith.constant 0 : i32
    %c0_i32_1 = arith.constant 0 : i32
    return %c0_i32, %c0_i32_0 : i32, i32
  }
  func.func @transform_14(%arg0: i32) -> (i32, i32) {
    %c0_i32 = arith.constant 0 : i32
    %c0_i32_0 = arith.constant 0 : i32
    %c0_i32_1 = arith.constant 0 : i32
    return %c0_i32, %c0_i32_0 : i32, i32
  }
  func.func @transform_15(%arg0: i32) -> (i32, i32) {
    %c0_i32 = arith.constant 0 : i32
    %c0_i32_0 = arith.constant 0 : i32
    %c0_i32_1 = arith.constant 0 : i32
    return %c0_i32, %c0_i32_0 : i32, i32
  }
}

</mosaic_0001>

<llo_original>
// kernel: lenet_forward.1
$region0: #{lenet_forward.1}
  #allocation0 [shape = 'u32[]', space=smem, size = 0x4, offset = 0x4, fixed_abs, tag = 'smem constant byte address 0x4 - core index']
  #allocation1 [shape = 'u32[72,128]{1,0:T(1,128)}', space=vmem, size = 0x9000, scoped, tag = 'internal scratch']
  #allocation2 [shape = 'bf16[40,128]{1,0:T(8,128)(2,1)}', space=vmem, size = 0x2800, scoped, tag = 'scratch operand']
  %s0 = inlined_call_operand.vmem [shape: bf16[72,32], index: 0, kind: input, shape index: {}]
  %s1 = inlined_call_operand.hbm [shape: bf16[5,32,256], index: 1, kind: input, shape index: {}]
  %s2 = inlined_call_operand.vmem [shape: f32[1,256], index: 2, kind: input, shape index: {}]
  %s3 = inlined_call_operand.vmem [shape: bf16[40,64], index: 3, kind: input, shape index: {}]
  %s4 = inlined_call_operand.vmem [shape: bf16[40,64], index: 4, kind: input, shape index: {}]
  %s5 = inlined_call_operand.hbm [shape: bf16[5,128,256], index: 5, kind: input, shape index: {}]
  %s6 = inlined_call_operand.vmem [shape: f32[1,256], index: 6, kind: input, shape index: {}]
  %s7 = inlined_call_operand.vmem [shape: bf16[40,32], index: 7, kind: input, shape index: {}]
  %s8 = inlined_call_operand.vmem [shape: bf16[40,32], index: 8, kind: input, shape index: {}]
  %s9 = inlined_call_operand.hbm [shape: bf16[5,128,128], index: 9, kind: input, shape index: {}]
  %s10 = inlined_call_operand.vmem [shape: f32[1,128], index: 10, kind: input, shape index: {}]
  %s11 = inlined_call_operand.vmem [shape: bf16[128,128], index: 11, kind: input, shape index: {}]
  %s12 = inlined_call_operand.vmem [shape: f32[1,128], index: 12, kind: input, shape index: {}]
  %s13 = inlined_call_operand.vmem [shape: bf16[128,128], index: 13, kind: input, shape index: {}]
  %s14 = inlined_call_operand.vmem [shape: f32[1,128], index: 14, kind: input, shape index: {}]
  %s15 = inlined_call_operand.vmem [shape: f32[8,128], index: 15, kind: output, shape index: {}]
  %s16 = sld [smem:[#allocation0]]
  $region82: #{lenet_forward.1} parent=0
    _
  %s18 = ssub.s32 1, %s16
  %s19 = scalar_select 0, %s18, %s16
  $region1: #{lenet_forward.1} parent=0
    #allocation3 [shape = 'u8[81920]{0}', space=vmem, size = 0x14000, scoped, tag = 'input window, operand 1, single buffered']
    #allocation4 [shape = 's32[1]{0}', space=sflag, size = 0x4, scoped, tag = 'scoped memory for lenet_forward.1']
    #allocation5 [shape = 'u8[327680]{0}', space=vmem, size = 0x50000, scoped, tag = 'input window, operand 5, single buffered']
    #allocation6 [shape = 's32[1]{0}', space=sflag, size = 0x4, scoped, tag = 'scoped memory for lenet_forward.1']
    #allocation7 [shape = 'u8[163840]{0}', space=vmem, size = 0x28000, scoped, tag = 'input window, operand 9, single buffered']
    %20 = vsyncpa [#allocation4], 0
    %21 = vsyncpa [#allocation6], 0
    // Predicated region
    $region2: #{lenet_forward.1} parent=1 // pred_check
      _
    $region3: #{lenet_forward.1} parent=1 // pred_check_branch
      %23 = sbr.rel (0) target = $region5
    $region4: #{lenet_forward.1} parent=1 // pred_region
      _
    $region5: #{lenet_forward.1} parent=1 // pred_fallthru
      _
    // Predicated region
    $region6: #{lenet_forward.1} parent=1 // pred_check
      _
    $region7: #{lenet_forward.1} parent=1 // pred_check_branch
      %25 = sbr.rel (0) target = $region9
    $region8: #{lenet_forward.1} parent=1 // pred_region
      %27 = vsyncadd [#allocation4], 0
      %s28 = sshll.u32 %s1, 4
      %s29 = int_to_ptr.hbm [resolvable:$true] %s28
      %s30 = sshll.u32 [#allocation3], 4
      %s31 = int_to_ptr.vmem [resolvable:$true] %s30
      %36 = dma.hbm_to_vmem [thread:$0]  %s29, 2560, %s31, [#allocation4], 128, 128, 8
    $region9: #{lenet_forward.1} parent=1 // pred_fallthru
      _
    // Predicated region
    $region10: #{lenet_forward.1} parent=1 // pred_check
      _
    $region11: #{lenet_forward.1} parent=1 // pred_check_branch
      %38 = sbr.rel (0) target = $region13
    $region12: #{lenet_forward.1} parent=1 // pred_region
      _
    $region13: #{lenet_forward.1} parent=1 // pred_fallthru
      _
    // Predicated region
    $region14: #{lenet_forward.1} parent=1 // pred_check
      _
    $region15: #{lenet_forward.1} parent=1 // pred_check_branch
      %40 = sbr.rel (0) target = $region17
    $region16: #{lenet_forward.1} parent=1 // pred_region
      _
    $region17: #{lenet_forward.1} parent=1 // pred_fallthru
      _
    // Predicated region
    $region18: #{lenet_forward.1} parent=1 // pred_check
      _
    $region19: #{lenet_forward.1} parent=1 // pred_check_branch
      %42 = sbr.rel (0) target = $region21
    $region20: #{lenet_forward.1} parent=1 // pred_region
      _
    $region21: #{lenet_forward.1} parent=1 // pred_fallthru
      _
    // Predicated region
    $region22: #{lenet_forward.1} parent=1 // pred_check
      _
    $region23: #{lenet_forward.1} parent=1 // pred_check_branch
      %44 = sbr.rel (0) target = $region25
    $region24: #{lenet_forward.1} parent=1 // pred_region
      %46 = vsyncadd [#allocation6], 0
      %s47 = sshll.u32 %s5, 4
      %s48 = int_to_ptr.hbm [resolvable:$true] %s47
      %s49 = sshll.u32 [#allocation5], 4
      %s50 = int_to_ptr.vmem [resolvable:$true] %s49
      %55 = dma.hbm_to_vmem [thread:$0]  %s48, 10240, %s50, [#allocation6], 128, 128, 8
    $region25: #{lenet_forward.1} parent=1 // pred_fallthru
      _
    // Predicated region
    $region26: #{lenet_forward.1} parent=1 // pred_check
      _
    $region27: #{lenet_forward.1} parent=1 // pred_check_branch
      %57 = sbr.rel (0) target = $region29
    $region28: #{lenet_forward.1} parent=1 // pred_region
      _
    $region29: #{lenet_forward.1} parent=1 // pred_fallthru
      _
    // Predicated region
    $region30: #{lenet_forward.1} parent=1 // pred_check
      _
    $region31: #{lenet_forward.1} parent=1 // pred_check_branch
      %59 = sbr.rel (0) target = $region33
    $region32: #{lenet_forward.1} parent=1 // pred_region
      _
    $region33: #{lenet_forward.1} parent=1 // pred_fallthru
      _
    // Predicated region
    $region34: #{lenet_forward.1} parent=1 // pred_check
      _
    $region35: #{lenet_forward.1} parent=1 // pred_check_branch
      %61 = sbr.rel (0) target = $region37
    $region36: #{lenet_forward.1} parent=1 // pred_region
      _
    $region37: #{lenet_forward.1} parent=1 // pred_fallthru
      _
    // Predicated region
    $region38: #{lenet_forward.1} parent=1 // pred_check
      _
    $region39: #{lenet_forward.1} parent=1 // pred_check_branch
      %63 = sbr.rel (0) target = $region41
    $region40: #{lenet_forward.1} parent=1 // pred_region
      %65 = vsyncadd [#allocation6], 0
      %s66 = sshll.u32 %s9, 4
      %s67 = int_to_ptr.hbm [resolvable:$true] %s66
      %s68 = sshll.u32 [#allocation7], 4
      %s69 = int_to_ptr.vmem [resolvable:$true] %s68
      %74 = dma.hbm_to_vmem [thread:$0]  %s67, 5120, %s69, [#allocation6], 64, 64, 4
    $region41: #{lenet_forward.1} parent=1 // pred_fallthru
      _
    // Predicated region
    $region42: #{lenet_forward.1} parent=1 // pred_check
      _
    $region43: #{lenet_forward.1} parent=1 // pred_check_branch
      %76 = sbr.rel (0) target = $region45
    $region44: #{lenet_forward.1} parent=1 // pred_region
      _
    $region45: #{lenet_forward.1} parent=1 // pred_fallthru
      _
    // Predicated region
    $region46: #{lenet_forward.1} parent=1 // pred_check
      _
    $region47: #{lenet_forward.1} parent=1 // pred_check_branch
      %78 = sbr.rel (0) target = $region49
    $region48: #{lenet_forward.1} parent=1 // pred_region
      _
    $region49: #{lenet_forward.1} parent=1 // pred_fallthru
      _
    // Predicated region
    $region50: #{lenet_forward.1} parent=1 // pred_check
      _
    $region51: #{lenet_forward.1} parent=1 // pred_check_branch
      %80 = sbr.rel (0) target = $region53
    $region52: #{lenet_forward.1} parent=1 // pred_region
      _
    $region53: #{lenet_forward.1} parent=1 // pred_fallthru
      _
    // Predicated region
    $region54: #{lenet_forward.1} parent=1 // pred_check
      _
    $region55: #{lenet_forward.1} parent=1 // pred_check_branch
      %82 = sbr.rel (0) target = $region57
    $region56: #{lenet_forward.1} parent=1 // pred_region
      _
    $region57: #{lenet_forward.1} parent=1 // pred_fallthru
      _
    // Predicated region
    $region58: #{lenet_forward.1} parent=1 // pred_check
      _
    $region59: #{lenet_forward.1} parent=1 // pred_check_branch
      %84 = sbr.rel (0) target = $region61
    $region60: #{lenet_forward.1} parent=1 // pred_region
      _
    $region61: #{lenet_forward.1} parent=1 // pred_fallthru
      _
    // Predicated region
    $region62: #{lenet_forward.1} parent=1 // pred_check
      _
    $region63: #{lenet_forward.1} parent=1 // pred_check_branch
      %86 = sbr.rel (0) target = $region65
    $region64: #{lenet_forward.1} parent=1 // pred_region
      %88 = dma.done [#allocation4], 2560
    $region65: #{lenet_forward.1} parent=1 // pred_fallthru
      _
    // Predicated region
    $region66: #{lenet_forward.1} parent=1 // pred_check
      _
    $region67: #{lenet_forward.1} parent=1 // pred_check_branch
      %90 = sbr.rel (0) target = $region69
    $region68: #{lenet_forward.1} parent=1 // pred_region
      %92 = dma.done [#allocation6], 10240
    $region69: #{lenet_forward.1} parent=1 // pred_fallthru
      _
    // Predicated region
    $region70: #{lenet_forward.1} parent=1 // pred_check
      _
    $region71: #{lenet_forward.1} parent=1 // pred_check_branch
      %94 = sbr.rel (0) target = $region73
    $region72: #{lenet_forward.1} parent=1 // pred_region
      %96 = dma.done [#allocation6], 5120
    $region73: #{lenet_forward.1} parent=1 // pred_fallthru
      _
    %v98 = vld [vmem:[%s0] sm:$0xf]
    %v99 = vld [vmem:[%s0 + $0x4] sm:$0xf]
    %v100 = vld [vmem:[%s0 + $0x8] sm:$0xf]
    %v101 = vld [vmem:[%s0 + $0xc] sm:$0xf]
    %v102 = vld [vmem:[%s0 + $0x10] sm:$0xf]
    %v103 = vld [vmem:[%s0 + $0x14] sm:$0xf]
    %v104 = vld [vmem:[%s0 + $0x18] sm:$0xf]
    %v105 = vld [vmem:[%s0 + $0x1c] sm:$0xf]
    %v106 = vld [vmem:[#allocation3] sm:$0xff]
    %v107 = vld [vmem:[#allocation3 + $0x8] sm:$0xff]
    %v108 = vld [vmem:[#allocation3 + $0x10] sm:$0xff]
    %v109 = vld [vmem:[#allocation3 + $0x18] sm:$0xff]
    %v110 = vld [vmem:[%s0 + $0x20] sm:$0x1]
    %s111 = scalar_lea.vmem [#allocation3], 32
    %v112 = vld [vmem:[%s111] sm:$0xff]
    %v113 = vld [vmem:[%s111 + $0x8] sm:$0xff]
    %v114 = vld [vmem:[%s111 + $0x10] sm:$0xff]
    %v115 = vld [vmem:[%s111 + $0x18] sm:$0xff]
    %v125 = vunpack.c.l.b16 %v98
    %v126 = vunpack.c.l.b16 %v99
    %v127 = vunpack.c.l.b16 %v100
    %v128 = vunpack.c.l.b16 %v101
    %v129 = vunpack.c.l.b16 %v102
    %v130 = vunpack.c.l.b16 %v103
    %v131 = vunpack.c.l.b16 %v104
    %v132 = vunpack.c.l.b16 %v105
    %v133 = vunpack.c.l.b16 %v110
    %v134 = vpack.c.b16 %v126, %v125
    %v135 = vpack.c.b16 %v128, %v127
    %v136 = vpack.c.b16 %v130, %v129
    %v137 = vpack.c.b16 %v132, %v131
    %v138 = vpack.c.b16 %v133, %v133
    %vm139 = vsmask.f32 7424
    %v141 = vshrl.u32 %v134, 16
    %v143 = vshll.u32 %v134, 16
    %v145 = vrot.slane %v143, 1
    %v146 = vor.u32 %v141, %v145
    %v148 = vshll.u32 %v135, 16
    %v150 = vrot.slane %v148, 1
    %v151 = vsel %vm139, %v146, %v150
    %v152 = vshrl.u32 %v135, 16
    %v154 = vor.u32 %v152, %v150
    %v156 = vshll.u32 %v136, 16
    %v158 = vrot.slane %v156, 1
    %v159 = vsel %vm139, %v154, %v158
    %v160 = vshrl.u32 %v136, 16
    %v162 = vor.u32 %v160, %v158
    %v164 = vshll.u32 %v137, 16
    %v166 = vrot.slane %v164, 1
    %v167 = vsel %vm139, %v162, %v166
    %v168 = vshrl.u32 %v137, 16
    %v170 = vor.u32 %v168, %v166
    %v172 = vshll.u32 %v138, 16
    %v174 = vrot.slane %v172, 1
    %v175 = vsel %vm139, %v170, %v174
    %v180 = vunpack.c.l.b16 %v112
    %v181 = vunpack.c.h.b16 %v112
    %v182 = vunpack.c.l.b16 %v113
    %v183 = vunpack.c.h.b16 %v113
    %v184 = vunpack.c.l.b16 %v114
    %v185 = vunpack.c.h.b16 %v114
    %v186 = vunpack.c.l.b16 %v115
    %v187 = vunpack.c.h.b16 %v115
    %v188 = vpack.c.b16 %v182, %v180
    %v189 = vpack.c.b16 %v183, %v181
    %v190 = vpack.c.b16 %v186, %v184
    %v191 = vpack.c.b16 %v187, %v185
    %vm196 = vcmask 261120
    %v198 = vsel %vm196, %v151, 0
    %v201 = vsel %vm196, %v159, 0
    %v204 = vsel %vm196, %v167, 0
    %v207 = vsel %vm196, %v175, 0
    %209 = vmatpush.bf16.msra.mxu0 0
    %210 = vmatpush.bf16.msra.mxu0 0
    %211 = vmatpush.bf16.msra.mxu0 0
    %212 = vmatpush.bf16.msra.mxu0 0
    %213 = vmatpush.bf16.msra.mxu0 0
    %214 = vmatpush.bf16.msra.mxu0 0
    %215 = vmatpush.bf16.msra.mxu0 %v190
    %216 = vmatpush.bf16.msra.mxu0 %v188
    %217 = vmatmul.bf16.gmra.mxu0 %v198
    %v218 = vpop.f32.mrf.mxu0
    %v219 = vadd.f32 0.0, %v218
    %v220 = vpop.f32.mrf.mxu0
    %v221 = vadd.f32 0.0, %v220
    %222 = vmatmul.bf16.gmra.mxu0 %v201
    %v223 = vpop.f32.mrf.mxu0
    %v224 = vadd.f32 0.0, %v223
    %v225 = vpop.f32.mrf.mxu0
    %v226 = vadd.f32 0.0, %v225
    %227 = vmatmul.bf16.gmra.mxu0 %v204
    %v228 = vpop.f32.mrf.mxu0
    %v229 = vadd.f32 0.0, %v228
    %v230 = vpop.f32.mrf.mxu0
    %v231 = vadd.f32 0.0, %v230
    %232 = vmatmul.bf16.gmra.mxu0 %v207
    %v233 = vpop.f32.mrf.mxu0
    %v234 = vadd.f32 0.0, %v233
    %v235 = vpop.f32.mrf.mxu0
    %v236 = vadd.f32 0.0, %v235
    %237 = vdwg.mxu0
    %238 = vmatpush.bf16.msra.mxu0 0
    %239 = vmatpush.bf16.msra.mxu0 0
    %240 = vmatpush.bf16.msra.mxu0 0
    %241 = vmatpush.bf16.msra.mxu0 0
    %242 = vmatpush.bf16.msra.mxu0 0
    %243 = vmatpush.bf16.msra.mxu0 0
    %244 = vmatpush.bf16.msra.mxu0 %v191
    %245 = vmatpush.bf16.msra.mxu0 %v189
    %246 = vmatmul.bf16.gmra.mxu0 %v198
    %v247 = vpop.f32.mrf.mxu0
    %v248 = vadd.f32 0.0, %v247
    %v249 = vpop.f32.mrf.mxu0
    %v250 = vadd.f32 0.0, %v249
    %251 = vmatmul.bf16.gmra.mxu0 %v201
    %v252 = vpop.f32.mrf.mxu0
    %v253 = vadd.f32 0.0, %v252
    %v254 = vpop.f32.mrf.mxu0
    %v255 = vadd.f32 0.0, %v254
    %256 = vmatmul.bf16.gmra.mxu0 %v204
    %v257 = vpop.f32.mrf.mxu0
    %v258 = vadd.f32 0.0, %v257
    %v259 = vpop.f32.mrf.mxu0
    %v260 = vadd.f32 0.0, %v259
    %261 = vmatmul.bf16.gmra.mxu0 %v207
    %v262 = vpop.f32.mrf.mxu0
    %v263 = vadd.f32 0.0, %v262
    %v264 = vpop.f32.mrf.mxu0
    %v265 = vadd.f32 0.0, %v264
    %266 = vdwg.mxu0
    %v271 = vunpack.c.l.b16 %v106
    %v272 = vunpack.c.h.b16 %v106
    %v273 = vunpack.c.l.b16 %v107
    %v274 = vunpack.c.h.b16 %v107
    %v275 = vunpack.c.l.b16 %v108
    %v276 = vunpack.c.h.b16 %v108
    %v277 = vunpack.c.l.b16 %v109
    %v278 = vunpack.c.h.b16 %v109
    %v279 = vpack.c.b16 %v273, %v271
    %v280 = vpack.c.b16 %v274, %v272
    %v281 = vpack.c.b16 %v277, %v275
    %v282 = vpack.c.b16 %v278, %v276
    %v287 = vsel %vm196, %v134, 0
    %v289 = vsel %vm196, %v135, 0
    %v291 = vsel %vm196, %v136, 0
    %v293 = vsel %vm196, %v137, 0
    %295 = vmatpush.bf16.msra.mxu0 0
    %296 = vmatpush.bf16.msra.mxu0 0
    %297 = vmatpush.bf16.msra.mxu0 0
    %298 = vmatpush.bf16.msra.mxu0 0
    %299 = vmatpush.bf16.msra.mxu0 0
    %300 = vmatpush.bf16.msra.mxu0 0
    %301 = vmatpush.bf16.msra.mxu0 %v281
    %302 = vmatpush.bf16.msra.mxu0 %v279
    %303 = vmatmul.bf16.gmra.mxu0 %v287
    %v304 = vpop.f32.mrf.mxu0
    %v305 = vadd.f32 %v219, %v304
    %v306 = vpop.f32.mrf.mxu0
    %v307 = vadd.f32 %v221, %v306
    %308 = vmatmul.bf16.gmra.mxu0 %v289
    %v309 = vpop.f32.mrf.mxu0
    %v310 = vadd.f32 %v224, %v309
    %v311 = vpop.f32.mrf.mxu0
    %v312 = vadd.f32 %v226, %v311
    %313 = vmatmul.bf16.gmra.mxu0 %v291
    %v314 = vpop.f32.mrf.mxu0
    %v315 = vadd.f32 %v229, %v314
    %v316 = vpop.f32.mrf.mxu0
    %v317 = vadd.f32 %v231, %v316
    %318 = vmatmul.bf16.gmra.mxu0 %v293
    %v319 = vpop.f32.mrf.mxu0
    %v320 = vadd.f32 %v234, %v319
    %v321 = vpop.f32.mrf.mxu0
    %v322 = vadd.f32 %v236, %v321
    %323 = vdwg.mxu0
    %324 = vmatpush.bf16.msra.mxu0 0
    %325 = vmatpush.bf16.msra.mxu0 0
    %326 = vmatpush.bf16.msra.mxu0 0
    %327 = vmatpush.bf16.msra.mxu0 0
    %328 = vmatpush.bf16.msra.mxu0 0
    %329 = vmatpush.bf16.msra.mxu0 0
    %330 = vmatpush.bf16.msra.mxu0 %v282
    %331 = vmatpush.bf16.msra.mxu0 %v280
    %332 = vmatmul.bf16.gmra.mxu0 %v287
    %v333 = vpop.f32.mrf.mxu0
    %v334 = vadd.f32 %v248, %v333
    %v335 = vpop.f32.mrf.mxu0
    %v336 = vadd.f32 %v250, %v335
    %337 = vmatmul.bf16.gmra.mxu0 %v289
    %v338 = vpop.f32.mrf.mxu0
    %v339 = vadd.f32 %v253, %v338
    %v340 = vpop.f32.mrf.mxu0
    %v341 = vadd.f32 %v255, %v340
    %342 = vmatmul.bf16.gmra.mxu0 %v291
    %v343 = vpop.f32.mrf.mxu0
    %v344 = vadd.f32 %v258, %v343
    %v345 = vpop.f32.mrf.mxu0
    %v346 = vadd.f32 %v260, %v345
    %347 = vmatmul.bf16.gmra.mxu0 %v293
    %v348 = vpop.f32.mrf.mxu0
    %v349 = vadd.f32 %v263, %v348
    %v350 = vpop.f32.mrf.mxu0
    %v351 = vadd.f32 %v265, %v350
    %352 = vdwg.mxu0
    %v353 = vld [vmem:[%s0] sm:$0xe]
    %s354 = scalar_lea.vmem [#allocation3], 64
    %v355 = vld [vmem:[%s354] sm:$0xff]
    %v356 = vld [vmem:[%s354 + $0x8] sm:$0xff]
    %v357 = vld [vmem:[%s354 + $0x10] sm:$0xff]
    %v358 = vld [vmem:[%s354 + $0x18] sm:$0xff]
    %v360 = vunpack.c.l.b16 %v353
    %v361 = vpack.c.b16 %v126, %v360
    %vm362 = vcmask 1046528
    %v363 = vrot.slane %v361, 1
    %v364 = vrot.slane %v135, 1
    %v365 = vsel %vm362, %v363, %v364
    %v366 = vrot.slane %v136, 1
    %v367 = vsel %vm362, %v364, %v366
    %v368 = vrot.slane %v137, 1
    %v369 = vsel %vm362, %v366, %v368
    %v370 = vrot.slane %v138, 1
    %v371 = vsel %vm362, %v368, %v370
    %v376 = vunpack.c.l.b16 %v355
    %v377 = vunpack.c.h.b16 %v355
    %v378 = vunpack.c.l.b16 %v356
    %v379 = vunpack.c.h.b16 %v356
    %v380 = vunpack.c.l.b16 %v357
    %v381 = vunpack.c.h.b16 %v357
    %v382 = vunpack.c.l.b16 %v358
    %v383 = vunpack.c.h.b16 %v358
    %v384 = vpack.c.b16 %v378, %v376
    %v385 = vpack.c.b16 %v379, %v377
    %v386 = vpack.c.b16 %v382, %v380
    %v387 = vpack.c.b16 %v383, %v381
    %v393 = vsel %vm196, %v365, 0
    %v396 = vsel %vm196, %v367, 0
    %v399 = vsel %vm196, %v369, 0
    %v402 = vsel %vm196, %v371, 0
    %404 = vmatpush.bf16.msra.mxu0 0
    %405 = vmatpush.bf16.msra.mxu0 0
    %406 = vmatpush.bf16.msra.mxu0 0
    %407 = vmatpush.bf16.msra.mxu0 0
    %408 = vmatpush.bf16.msra.mxu0 0
    %409 = vmatpush.bf16.msra.mxu0 0
    %410 = vmatpush.bf16.msra.mxu0 %v386
    %411 = vmatpush.bf16.msra.mxu0 %v384
    %412 = vmatmul.bf16.gmra.mxu0 %v393
    %v413 = vpop.f32.mrf.mxu0
    %v414 = vadd.f32 0.0, %v413
    %v415 = vpop.f32.mrf.mxu0
    %v416 = vadd.f32 0.0, %v415
    %417 = vmatmul.bf16.gmra.mxu0 %v396
    %v418 = vpop.f32.mrf.mxu0
    %v419 = vadd.f32 0.0, %v418
    %v420 = vpop.f32.mrf.mxu0
    %v421 = vadd.f32 0.0, %v420
    %422 = vmatmul.bf16.gmra.mxu0 %v399
    %v423 = vpop.f32.mrf.mxu0
    %v424 = vadd.f32 0.0, %v423
    %v425 = vpop.f32.mrf.mxu0
    %v426 = vadd.f32 0.0, %v425
    %427 = vmatmul.bf16.gmra.mxu0 %v402
    %v428 = vpop.f32.mrf.mxu0
    %v429 = vadd.f32 0.0, %v428
    %v430 = vpop.f32.mrf.mxu0
    %v431 = vadd.f32 0.0, %v430
    %432 = vdwg.mxu0
    %433 = vmatpush.bf16.msra.mxu0 0
    %434 = vmatpush.bf16.msra.mxu0 0
    %435 = vmatpush.bf16.msra.mxu0 0
    %436 = vmatpush.bf16.msra.mxu0 0
    %437 = vmatpush.bf16.msra.mxu0 0
    %438 = vmatpush.bf16.msra.mxu0 0
    %439 = vmatpush.bf16.msra.mxu0 %v387
    %440 = vmatpush.bf16.msra.mxu0 %v385
    %441 = vmatmul.bf16.gmra.mxu0 %v393
    %v442 = vpop.f32.mrf.mxu0
    %v443 = vadd.f32 0.0, %v442
    %v444 = vpop.f32.mrf.mxu0
    %v445 = vadd.f32 0.0, %v444
    %446 = vmatmul.bf16.gmra.mxu0 %v396
    %v447 = vpop.f32.mrf.mxu0
    %v448 = vadd.f32 0.0, %v447
    %v449 = vpop.f32.mrf.mxu0
    %v450 = vadd.f32 0.0, %v449
    %451 = vmatmul.bf16.gmra.mxu0 %v399
    %v452 = vpop.f32.mrf.mxu0
    %v453 = vadd.f32 0.0, %v452
    %v454 = vpop.f32.mrf.mxu0
    %v455 = vadd.f32 0.0, %v454
    %456 = vmatmul.bf16.gmra.mxu0 %v402
    %v457 = vpop.f32.mrf.mxu0
    %v458 = vadd.f32 0.0, %v457
    %v459 = vpop.f32.mrf.mxu0
    %v460 = vadd.f32 0.0, %v459
    %461 = vdwg.mxu0
    %v462 = vadd.f32 %v305, %v414
    %v463 = vadd.f32 %v334, %v443
    %v464 = vadd.f32 %v307, %v416
    %v465 = vadd.f32 %v336, %v445
    %v466 = vadd.f32 %v310, %v419
    %v467 = vadd.f32 %v339, %v448
    %v468 = vadd.f32 %v312, %v421
    %v469 = vadd.f32 %v341, %v450
    %v470 = vadd.f32 %v315, %v424
    %v471 = vadd.f32 %v344, %v453
    %v472 = vadd.f32 %v317, %v426
    %v473 = vadd.f32 %v346, %v455
    %v474 = vadd.f32 %v320, %v429
    %v475 = vadd.f32 %v349, %v458
    %v476 = vadd.f32 %v322, %v431
    %v477 = vadd.f32 %v351, %v460
    %v478 = vld [vmem:[%s0 + $0x20] sm:$0x3]
    %s479 = scalar_lea.vmem [#allocation3], 96
    %v480 = vld [vmem:[%s479] sm:$0xff]
    %v481 = vld [vmem:[%s479 + $0x8] sm:$0xff]
    %v482 = vld [vmem:[%s479 + $0x10] sm:$0xff]
    %v483 = vld [vmem:[%s479 + $0x18] sm:$0xff]
    %v485 = vunpack.c.l.b16 %v478
    %v486 = vpack.c.b16 %v485, %v485
    %vm487 = vsmask.f32 6400
    %v489 = vshrl.u32 %v361, 16
    %v491 = vrot.slane %v489, 1
    %v492 = vshll.u32 %v361, 16
    %v494 = vrot.slane %v492, 2
    %v495 = vor.u32 %v491, %v494
    %v496 = vrot.slane %v152, 1
    %v497 = vrot.slane %v148, 2
    %v498 = vor.u32 %v496, %v497
    %v499 = vsel %vm487, %v495, %v498
    %v500 = vrot.slane %v160, 1
    %v501 = vrot.slane %v156, 2
    %v502 = vor.u32 %v500, %v501
    %v503 = vsel %vm487, %v498, %v502
    %v504 = vrot.slane %v168, 1
    %v505 = vrot.slane %v164, 2
    %v506 = vor.u32 %v504, %v505
    %v507 = vsel %vm487, %v502, %v506
    %v509 = vshrl.u32 %v486, 16
    %v511 = vrot.slane %v509, 1
    %v512 = vshll.u32 %v486, 16
    %v514 = vrot.slane %v512, 2
    %v515 = vor.u32 %v511, %v514
    %v516 = vsel %vm487, %v506, %v515
    %v521 = vunpack.c.l.b16 %v480
    %v522 = vunpack.c.h.b16 %v480
    %v523 = vunpack.c.l.b16 %v481
    %v524 = vunpack.c.h.b16 %v481
    %v525 = vunpack.c.l.b16 %v482
    %v526 = vunpack.c.h.b16 %v482
    %v527 = vunpack.c.l.b16 %v483
    %v528 = vunpack.c.h.b16 %v483
    %v529 = vpack.c.b16 %v523, %v521
    %v530 = vpack.c.b16 %v524, %v522
    %v531 = vpack.c.b16 %v527, %v525
    %v532 = vpack.c.b16 %v528, %v526
    %v538 = vsel %vm196, %v499, 0
    %v541 = vsel %vm196, %v503, 0
    %v544 = vsel %vm196, %v507, 0
    %v547 = vsel %vm196, %v516, 0
    %549 = vmatpush.bf16.msra.mxu0 0
    %550 = vmatpush.bf16.msra.mxu0 0
    %551 = vmatpush.bf16.msra.mxu0 0
    %552 = vmatpush.bf16.msra.mxu0 0
    %553 = vmatpush.bf16.msra.mxu0 0
    %554 = vmatpush.bf16.msra.mxu0 0
    %555 = vmatpush.bf16.msra.mxu0 %v531
    %556 = vmatpush.bf16.msra.mxu0 %v529
    %557 = vmatmul.bf16.gmra.mxu0 %v538
    %v558 = vpop.f32.mrf.mxu0
    %v559 = vadd.f32 0.0, %v558
    %v560 = vpop.f32.mrf.mxu0
    %v561 = vadd.f32 0.0, %v560
    %562 = vmatmul.bf16.gmra.mxu0 %v541
    %v563 = vpop.f32.mrf.mxu0
    %v564 = vadd.f32 0.0, %v563
    %v565 = vpop.f32.mrf.mxu0
    %v566 = vadd.f32 0.0, %v565
    %567 = vmatmul.bf16.gmra.mxu0 %v544
    %v568 = vpop.f32.mrf.mxu0
    %v569 = vadd.f32 0.0, %v568
    %v570 = vpop.f32.mrf.mxu0
    %v571 = vadd.f32 0.0, %v570
    %572 = vmatmul.bf16.gmra.mxu0 %v547
    %v573 = vpop.f32.mrf.mxu0
    %v574 = vadd.f32 0.0, %v573
    %v575 = vpop.f32.mrf.mxu0
    %v576 = vadd.f32 0.0, %v575
    %577 = vdwg.mxu0
    %578 = vmatpush.bf16.msra.mxu0 0
    %579 = vmatpush.bf16.msra.mxu0 0
    %580 = vmatpush.bf16.msra.mxu0 0
    %581 = vmatpush.bf16.msra.mxu0 0
    %582 = vmatpush.bf16.msra.mxu0 0
    %583 = vmatpush.bf16.msra.mxu0 0
    %584 = vmatpush.bf16.msra.mxu0 %v532
    %585 = vmatpush.bf16.msra.mxu0 %v530
    %586 = vmatmul.bf16.gmra.mxu0 %v538
    %v587 = vpop.f32.mrf.mxu0
    %v588 = vadd.f32 0.0, %v587
    %v589 = vpop.f32.mrf.mxu0
    %v590 = vadd.f32 0.0, %v589
    %591 = vmatmul.bf16.gmra.mxu0 %v541
    %v592 = vpop.f32.mrf.mxu0
    %v593 = vadd.f32 0.0, %v592
    %v594 = vpop.f32.mrf.mxu0
    %v595 = vadd.f32 0.0, %v594
    %596 = vmatmul.bf16.gmra.mxu0 %v544
    %v597 = vpop.f32.mrf.mxu0
    %v598 = vadd.f32 0.0, %v597
    %v599 = vpop.f32.mrf.mxu0
    %v600 = vadd.f32 0.0, %v599
    %601 = vmatmul.bf16.gmra.mxu0 %v547
    %v602 = vpop.f32.mrf.mxu0
    %v603 = vadd.f32 0.0, %v602
    %v604 = vpop.f32.mrf.mxu0
    %v605 = vadd.f32 0.0, %v604
    %606 = vdwg.mxu0
    %v607 = vadd.f32 %v462, %v559
    %v608 = vadd.f32 %v463, %v588
    %v609 = vadd.f32 %v464, %v561
    %v610 = vadd.f32 %v465, %v590
    %v611 = vadd.f32 %v466, %v564
    %v612 = vadd.f32 %v467, %v593
    %v613 = vadd.f32 %v468, %v566
    %v614 = vadd.f32 %v469, %v595
    %v615 = vadd.f32 %v470, %v569
    %v616 = vadd.f32 %v471, %v598
    %v617 = vadd.f32 %v472, %v571
    %v618 = vadd.f32 %v473, %v600
    %v619 = vadd.f32 %v474, %v574
    %v620 = vadd.f32 %v475, %v603
    %v621 = vadd.f32 %v476, %v576
    %v622 = vadd.f32 %v477, %v605
    %v623 = vld [vmem:[%s0] sm:$0xc]
    %s624 = scalar_lea.vmem [#allocation3], 128
    %v625 = vld [vmem:[%s624] sm:$0xff]
    %v626 = vld [vmem:[%s624 + $0x8] sm:$0xff]
    %v627 = vld [vmem:[%s624 + $0x10] sm:$0xff]
    %v628 = vld [vmem:[%s624 + $0x18] sm:$0xff]
    %v630 = vunpack.c.l.b16 %v623
    %v631 = vpack.c.b16 %v126, %v630
    %vm632 = vcmask 1045504
    %v633 = vrot.slane %v631, 2
    %v634 = vrot.slane %v135, 2
    %v635 = vsel %vm632, %v633, %v634
    %v636 = vrot.slane %v136, 2
    %v637 = vsel %vm632, %v634, %v636
    %v638 = vrot.slane %v137, 2
    %v639 = vsel %vm632, %v636, %v638
    %v640 = vrot.slane %v486, 2
    %v641 = vsel %vm632, %v638, %v640
    %v646 = vunpack.c.l.b16 %v625
    %v647 = vunpack.c.h.b16 %v625
    %v648 = vunpack.c.l.b16 %v626
    %v649 = vunpack.c.h.b16 %v626
    %v650 = vunpack.c.l.b16 %v627
    %v651 = vunpack.c.h.b16 %v627
    %v652 = vunpack.c.l.b16 %v628
    %v653 = vunpack.c.h.b16 %v628
    %v654 = vpack.c.b16 %v648, %v646
    %v655 = vpack.c.b16 %v649, %v647
    %v656 = vpack.c.b16 %v652, %v650
    %v657 = vpack.c.b16 %v653, %v651
    %v663 = vsel %vm196, %v635, 0
    %v666 = vsel %vm196, %v637, 0
    %v669 = vsel %vm196, %v639, 0
    %v672 = vsel %vm196, %v641, 0
    %674 = vmatpush.bf16.msra.mxu0 0
    %675 = vmatpush.bf16.msra.mxu0 0
    %676 = vmatpush.bf16.msra.mxu0 0
    %677 = vmatpush.bf16.msra.mxu0 0
    %678 = vmatpush.bf16.msra.mxu0 0
    %679 = vmatpush.bf16.msra.mxu0 0
    %680 = vmatpush.bf16.msra.mxu0 %v656
    %681 = vmatpush.bf16.msra.mxu0 %v654
    %682 = vmatmul.bf16.gmra.mxu0 %v663
    %v683 = vpop.f32.mrf.mxu0
    %v684 = vadd.f32 0.0, %v683
    %v685 = vpop.f32.mrf.mxu0
    %v686 = vadd.f32 0.0, %v685
    %687 = vmatmul.bf16.gmra.mxu0 %v666
    %v688 = vpop.f32.mrf.mxu0
    %v689 = vadd.f32 0.0, %v688
    %v690 = vpop.f32.mrf.mxu0
    %v691 = vadd.f32 0.0, %v690
    %692 = vmatmul.bf16.gmra.mxu0 %v669
    %v693 = vpop.f32.mrf.mxu0
    %v694 = vadd.f32 0.0, %v693
    %v695 = vpop.f32.mrf.mxu0
    %v696 = vadd.f32 0.0, %v695
    %697 = vmatmul.bf16.gmra.mxu0 %v672
    %v698 = vpop.f32.mrf.mxu0
    %v699 = vadd.f32 0.0, %v698
    %v700 = vpop.f32.mrf.mxu0
    %v701 = vadd.f32 0.0, %v700
    %702 = vdwg.mxu0
    %703 = vmatpush.bf16.msra.mxu0 0
    %704 = vmatpush.bf16.msra.mxu0 0
    %705 = vmatpush.bf16.msra.mxu0 0
    %706 = vmatpush.bf16.msra.mxu0 0
    %707 = vmatpush.bf16.msra.mxu0 0
    %708 = vmatpush.bf16.msra.mxu0 0
    %709 = vmatpush.bf16.msra.mxu0 %v657
    %710 = vmatpush.bf16.msra.mxu0 %v655
    %711 = vmatmul.bf16.gmra.mxu0 %v663
    %v712 = vpop.f32.mrf.mxu0
    %v713 = vadd.f32 0.0, %v712
    %v714 = vpop.f32.mrf.mxu0
    %v715 = vadd.f32 0.0, %v714
    %716 = vmatmul.bf16.gmra.mxu0 %v666
    %v717 = vpop.f32.mrf.mxu0
    %v718 = vadd.f32 0.0, %v717
    %v719 = vpop.f32.mrf.mxu0
    %v720 = vadd.f32 0.0, %v719
    %721 = vmatmul.bf16.gmra.mxu0 %v669
    %v722 = vpop.f32.mrf.mxu0
    %v723 = vadd.f32 0.0, %v722
    %v724 = vpop.f32.mrf.mxu0
    %v725 = vadd.f32 0.0, %v724
    %726 = vmatmul.bf16.gmra.mxu0 %v672
    %v727 = vpop.f32.mrf.mxu0
    %v728 = vadd.f32 0.0, %v727
    %v729 = vpop.f32.mrf.mxu0
    %v730 = vadd.f32 0.0, %v729
    %731 = vdwg.mxu0
    %v732 = vadd.f32 %v607, %v684
    %v733 = vadd.f32 %v608, %v713
    %v734 = vadd.f32 %v609, %v686
    %v735 = vadd.f32 %v610, %v715
    %v736 = vadd.f32 %v611, %v689
    %v737 = vadd.f32 %v612, %v718
    %v738 = vadd.f32 %v613, %v691
    %v739 = vadd.f32 %v614, %v720
    %v740 = vadd.f32 %v615, %v694
    %v741 = vadd.f32 %v616, %v723
    %v742 = vadd.f32 %v617, %v696
    %v743 = vadd.f32 %v618, %v725
    %v744 = vadd.f32 %v619, %v699
    %v745 = vadd.f32 %v620, %v728
    %v746 = vadd.f32 %v621, %v701
    %v747 = vadd.f32 %v622, %v730
    %v748 = vld [vmem:[%s2] sm:$0x3]
    %v750 = vperm.slane %v748, 0
    %v751 = vperm.slane %v748, 1
    %v754 = vadd.f32 %v732, %v750
    %v755 = vadd.f32 %v733, %v751
    %v756 = vadd.f32 %v734, %v750
    %v757 = vadd.f32 %v735, %v751
    %v758 = vadd.f32 %v736, %v750
    %v759 = vadd.f32 %v737, %v751
    %v760 = vadd.f32 %v738, %v750
    %v761 = vadd.f32 %v739, %v751
    %v762 = vadd.f32 %v740, %v750
    %v763 = vadd.f32 %v741, %v751
    %v764 = vadd.f32 %v742, %v750
    %v765 = vadd.f32 %v743, %v751
    %v766 = vadd.f32 %v744, %v750
    %v767 = vadd.f32 %v745, %v751
    %v768 = vadd.f32 %v746, %v750
    %v769 = vadd.f32 %v747, %v751
    %v770 = vmax.f32 %v754, 0.0
    %v771 = vmax.f32 %v755, 0.0
    %v772 = vmax.f32 %v756, 0.0
    %v773 = vmax.f32 %v757, 0.0
    %v774 = vmax.f32 %v758, 0.0
    %v775 = vmax.f32 %v759, 0.0
    %v776 = vmax.f32 %v760, 0.0
    %v777 = vmax.f32 %v761, 0.0
    %v778 = vmax.f32 %v762, 0.0
    %v779 = vmax.f32 %v763, 0.0
    %v780 = vmax.f32 %v764, 0.0
    %v781 = vmax.f32 %v765, 0.0
    %v782 = vmax.f32 %v766, 0.0
    %v783 = vmax.f32 %v767, 0.0
    %v784 = vmax.f32 %v768, 0.0
    %v785 = vmax.f32 %v769, 0.0
    %v786 = vmax.f32 %v770, %v771
    %v787 = vmax.f32 %v772, %v773
    %v788 = vmax.f32 %v774, %v775
    %v789 = vmax.f32 %v776, %v777
    %v790 = vmax.f32 %v778, %v779
    %v791 = vmax.f32 %v780, %v781
    %v792 = vmax.f32 %v782, %v783
    %v793 = vmax.f32 %v784, %v785
    %v794 = vpack.c.bf16 %v787, %v786
    %v795 = vpack.c.bf16 %v789, %v788
    %v796 = vpack.c.bf16 %v791, %v790
    %v797 = vpack.c.bf16 %v793, %v792
    %v798 = vld [vmem:[%s3] sm:$0xf]
    %v799 = vld [vmem:[%s3 + $0x4] sm:$0xf]
    %v800 = vld [vmem:[%s3 + $0x8] sm:$0xf]
    %v801 = vld [vmem:[%s3 + $0xc] sm:$0xf]
    %v802 = vld [vmem:[%s3 + $0x10] sm:$0xf]
    %v808 = vunpack.c.l.b16 %v798
    %v809 = vunpack.c.l.b16 %v799
    %v810 = vunpack.c.l.b16 %v800
    %v811 = vunpack.c.l.b16 %v801
    %v812 = vunpack.c.l.b16 %v802
    %v813 = vpack.c.b16 %v809, %v808
    %v814 = vpack.c.b16 %v811, %v810
    %v815 = vpack.c.b16 %v812, %v812
    %vm816 = vcmask 523264
    %v818 = vsel %vm816, %v813, 0
    %v821 = vsel %vm816, %v814, 0
    %v824 = vsel %vm816, %v815, 0
    %826 = vmatpush.bf16.msra.mxu0 0
    %827 = vmatpush.bf16.msra.mxu0 0
    %828 = vmatpush.bf16.msra.mxu0 0
    %829 = vmatpush.bf16.msra.mxu0 0
    %830 = vmatpush.bf16.msra.mxu0 %v797
    %831 = vmatpush.bf16.msra.mxu0 %v796
    %832 = vmatpush.bf16.msra.mxu0 %v795
    %833 = vmatpush.bf16.msra.mxu0 %v794
    %834 = vmatmul.bf16.gmra.mxu0 %v818
    %v835 = vpop.f32.mrf.mxu0
    %v836 = vadd.f32 0.0, %v835
    %v837 = vpop.f32.mrf.mxu0
    %v838 = vadd.f32 0.0, %v837
    %839 = vmatmul.bf16.gmra.mxu0 %v821
    %v840 = vpop.f32.mrf.mxu0
    %v841 = vadd.f32 0.0, %v840
    %v842 = vpop.f32.mrf.mxu0
    %v843 = vadd.f32 0.0, %v842
    %844 = vmatmul.bf16.gmra.mxu0 %v824
    %v845 = vpop.f32.mrf.mxu0
    %v846 = vadd.f32 0.0, %v845
    %v847 = vpop.f32.mrf.mxu0
    %848 = vdwg.mxu0
    %v849 = vld [vmem:[%s4] sm:$0xf]
    %v850 = vld [vmem:[%s4 + $0x4] sm:$0xf]
    %v851 = vld [vmem:[%s4 + $0x8] sm:$0xf]
    %v852 = vld [vmem:[%s4 + $0xc] sm:$0xf]
    %v853 = vld [vmem:[%s4 + $0x10] sm:$0xf]
    %v859 = vunpack.c.l.b16 %v849
    %v860 = vunpack.c.l.b16 %v850
    %v861 = vunpack.c.l.b16 %v851
    %v862 = vunpack.c.l.b16 %v852
    %v863 = vunpack.c.l.b16 %v853
    %v864 = vpack.c.b16 %v860, %v859
    %v865 = vpack.c.b16 %v862, %v861
    %v866 = vpack.c.b16 %v863, %v863
    %v868 = vsel %vm816, %v864, 0
    %v871 = vsel %vm816, %v865, 0
    %v874 = vsel %vm816, %v866, 0
    %876 = vmatpush.bf16.msra.mxu0 0
    %877 = vmatpush.bf16.msra.mxu0 0
    %878 = vmatpush.bf16.msra.mxu0 0
    %879 = vmatpush.bf16.msra.mxu0 0
    %880 = vmatpush.bf16.msra.mxu0 %v797
    %881 = vmatpush.bf16.msra.mxu0 %v796
    %882 = vmatpush.bf16.msra.mxu0 %v795
    %883 = vmatpush.bf16.msra.mxu0 %v794
    %884 = vmatmul.bf16.gmra.mxu0 %v868
    %v885 = vpop.f32.mrf.mxu0
    %v886 = vadd.f32 0.0, %v885
    %v887 = vpop.f32.mrf.mxu0
    %v888 = vadd.f32 0.0, %v887
    %889 = vmatmul.bf16.gmra.mxu0 %v871
    %v890 = vpop.f32.mrf.mxu0
    %v891 = vadd.f32 0.0, %v890
    %v892 = vpop.f32.mrf.mxu0
    %v893 = vadd.f32 0.0, %v892
    %894 = vmatmul.bf16.gmra.mxu0 %v874
    %v895 = vpop.f32.mrf.mxu0
    %v896 = vadd.f32 0.0, %v895
    %v897 = vpop.f32.mrf.mxu0
    %898 = vdwg.mxu0
    %v899 = vmax.f32 %v836, %v886
    %v900 = vmax.f32 %v838, %v888
    %v901 = vmax.f32 %v841, %v891
    %v902 = vmax.f32 %v843, %v893
    %v903 = vmax.f32 %v846, %v896
    %v904 = vpack.c.bf16 %v899, %v899
    %v905 = vpack.c.bf16 %v900, %v900
    %v906 = vpack.c.bf16 %v901, %v901
    %v907 = vpack.c.bf16 %v902, %v902
    %v908 = vpack.c.bf16 %v903, %v903
    %909 = vst [vmem:[#allocation2] sm:$0xf] %v904
    %910 = vst [vmem:[#allocation2 + $0x4] sm:$0xf] %v905
    %911 = vst [vmem:[#allocation2 + $0x8] sm:$0xf] %v906
    %912 = vst [vmem:[#allocation2 + $0xc] sm:$0xf] %v907
    %913 = vst [vmem:[#allocation2 + $0x10] sm:$0xf] %v908
    %v914 = vld [vmem:[#allocation2] sm:$0xf]
    %v915 = vld [vmem:[#allocation2 + $0x4] sm:$0xf]
    %v916 = vld [vmem:[#allocation2 + $0x8] sm:$0xf]
    %v917 = vld [vmem:[#allocation2 + $0xc] sm:$0xf]
    %v918 = vld [vmem:[#allocation5] sm:$0xff]
    %v919 = vld [vmem:[#allocation5 + $0x8] sm:$0xff]
    %v920 = vld [vmem:[#allocation5 + $0x10] sm:$0xff]
    %v921 = vld [vmem:[#allocation5 + $0x18] sm:$0xff]
    %v922 = vld [vmem:[#allocation5 + $0x20] sm:$0xff]
    %v923 = vld [vmem:[#allocation5 + $0x28] sm:$0xff]
    %v924 = vld [vmem:[#allocation5 + $0x30] sm:$0xff]
    %v925 = vld [vmem:[#allocation5 + $0x38] sm:$0xff]
    %v926 = vld [vmem:[#allocation5 + $0x40] sm:$0xff]
    %v927 = vld [vmem:[#allocation5 + $0x48] sm:$0xff]
    %v928 = vld [vmem:[#allocation5 + $0x50] sm:$0xff]
    %v929 = vld [vmem:[#allocation5 + $0x58] sm:$0xff]
    %v930 = vld [vmem:[#allocation5 + $0x60] sm:$0xff]
    %v931 = vld [vmem:[#allocation5 + $0x68] sm:$0xff]
    %v932 = vld [vmem:[#allocation5 + $0x70] sm:$0xff]
    %v933 = vld [vmem:[#allocation5 + $0x78] sm:$0xff]
    %v934 = vld [vmem:[#allocation2] sm:$0xf]
    %v935 = vld [vmem:[#allocation2 + $0x4] sm:$0xf]
    %v936 = vld [vmem:[#allocation2 + $0x8] sm:$0xf]
    %v937 = vld [vmem:[#allocation2 + $0xc] sm:$0xf]
    %v938 = vld [vmem:[#allocation2 + $0x10] sm:$0x1]
    %s939 = scalar_lea.vmem [#allocation5], 128
    %v940 = vld [vmem:[%s939] sm:$0xff]
    %v941 = vld [vmem:[%s939 + $0x8] sm:$0xff]
    %v942 = vld [vmem:[%s939 + $0x10] sm:$0xff]
    %v943 = vld [vmem:[%s939 + $0x18] sm:$0xff]
    %v944 = vld [vmem:[%s939 + $0x20] sm:$0xff]
    %v945 = vld [vmem:[%s939 + $0x28] sm:$0xff]
    %v946 = vld [vmem:[%s939 + $0x30] sm:$0xff]
    %v947 = vld [vmem:[%s939 + $0x38] sm:$0xff]
    %v948 = vld [vmem:[%s939 + $0x40] sm:$0xff]
    %v949 = vld [vmem:[%s939 + $0x48] sm:$0xff]
    %v950 = vld [vmem:[%s939 + $0x50] sm:$0xff]
    %v951 = vld [vmem:[%s939 + $0x58] sm:$0xff]
    %v952 = vld [vmem:[%s939 + $0x60] sm:$0xff]
    %v953 = vld [vmem:[%s939 + $0x68] sm:$0xff]
    %v954 = vld [vmem:[%s939 + $0x70] sm:$0xff]
    %v955 = vld [vmem:[%s939 + $0x78] sm:$0xff]
    %v961 = vunpack.c.l.b16 %v934
    %v962 = vunpack.c.l.b16 %v935
    %v963 = vunpack.c.l.b16 %v936
    %v964 = vunpack.c.l.b16 %v937
    %v965 = vunpack.c.l.b16 %v938
    %v966 = vpack.c.b16 %v962, %v961
    %v967 = vpack.c.b16 %v964, %v963
    %v968 = vpack.c.b16 %v965, %v965
    %v970 = vshrl.u32 %v966, 16
    %v972 = vshll.u32 %v966, 16
    %v974 = vrot.slane %v972, 1
    %v975 = vor.u32 %v970, %v974
    %v977 = vshll.u32 %v967, 16
    %v979 = vrot.slane %v977, 1
    %v980 = vsel %vm139, %v975, %v979
    %v981 = vshrl.u32 %v967, 16
    %v983 = vor.u32 %v981, %v979
    %v985 = vshll.u32 %v968, 16
    %v987 = vrot.slane %v985, 1
    %v988 = vsel %vm139, %v983, %v987
    %v1007 = vunpack.c.l.b16 %v940
    %v1008 = vunpack.c.h.b16 %v940
    %v1009 = vunpack.c.l.b16 %v941
    %v1010 = vunpack.c.h.b16 %v941
    %v1011 = vunpack.c.l.b16 %v942
    %v1012 = vunpack.c.h.b16 %v942
    %v1013 = vunpack.c.l.b16 %v943
    %v1014 = vunpack.c.h.b16 %v943
    %v1015 = vunpack.c.l.b16 %v944
    %v1016 = vunpack.c.h.b16 %v944
    %v1017 = vunpack.c.l.b16 %v945
    %v1018 = vunpack.c.h.b16 %v945
    %v1019 = vunpack.c.l.b16 %v946
    %v1020 = vunpack.c.h.b16 %v946
    %v1021 = vunpack.c.l.b16 %v947
    %v1022 = vunpack.c.h.b16 %v947
    %v1023 = vunpack.c.l.b16 %v948
    %v1024 = vunpack.c.h.b16 %v948
    %v1025 = vunpack.c.l.b16 %v949
    %v1026 = vunpack.c.h.b16 %v949
    %v1027 = vunpack.c.l.b16 %v950
    %v1028 = vunpack.c.h.b16 %v950
    %v1029 = vunpack.c.l.b16 %v951
    %v1030 = vunpack.c.h.b16 %v951
    %v1031 = vunpack.c.l.b16 %v952
    %v1032 = vunpack.c.h.b16 %v952
    %v1033 = vunpack.c.l.b16 %v953
    %v1034 = vunpack.c.h.b16 %v953
    %v1035 = vunpack.c.l.b16 %v954
    %v1036 = vunpack.c.h.b16 %v954
    %v1037 = vunpack.c.l.b16 %v955
    %v1038 = vunpack.c.h.b16 %v955
    %v1039 = vpack.c.b16 %v1009, %v1007
    %v1040 = vpack.c.b16 %v1010, %v1008
    %v1041 = vpack.c.b16 %v1013, %v1011
    %v1042 = vpack.c.b16 %v1014, %v1012
    %v1043 = vpack.c.b16 %v1017, %v1015
    %v1044 = vpack.c.b16 %v1018, %v1016
    %v1045 = vpack.c.b16 %v1021, %v1019
    %v1046 = vpack.c.b16 %v1022, %v1020
    %v1047 = vpack.c.b16 %v1025, %v1023
    %v1048 = vpack.c.b16 %v1026, %v1024
    %v1049 = vpack.c.b16 %v1029, %v1027
    %v1050 = vpack.c.b16 %v1030, %v1028
    %v1051 = vpack.c.b16 %v1033, %v1031
    %v1052 = vpack.c.b16 %v1034, %v1032
    %v1053 = vpack.c.b16 %v1037, %v1035
    %v1054 = vpack.c.b16 %v1038, %v1036
    %1071 = vmatpush.bf16.msra.mxu0 %v1053
    %1072 = vmatpush.bf16.msra.mxu0 %v1051
    %1073 = vmatpush.bf16.msra.mxu0 %v1049
    %1074 = vmatpush.bf16.msra.mxu0 %v1047
    %1075 = vmatpush.bf16.msra.mxu0 %v1045
    %1076 = vmatpush.bf16.msra.mxu0 %v1043
    %1077 = vmatpush.bf16.msra.mxu0 %v1041
    %1078 = vmatpush.bf16.msra.mxu0 %v1039
    %1079 = vmatmul.bf16.gmra.mxu0 %v980
    %v1080 = vpop.f32.mrf.mxu0
    %v1081 = vadd.f32 0.0, %v1080
    %v1082 = vpop.f32.mrf.mxu0
    %v1083 = vadd.f32 0.0, %v1082
    %1084 = vmatmul.bf16.gmra.mxu0 %v988
    %v1085 = vpop.f32.mrf.mxu0
    %v1086 = vadd.f32 0.0, %v1085
    %v1087 = vpop.f32.mrf.mxu0
    %v1088 = vadd.f32 0.0, %v1087
    %1089 = vdwg.mxu0
    %1090 = vmatpush.bf16.msra.mxu0 %v1054
    %1091 = vmatpush.bf16.msra.mxu0 %v1052
    %1092 = vmatpush.bf16.msra.mxu0 %v1050
    %1093 = vmatpush.bf16.msra.mxu0 %v1048
    %1094 = vmatpush.bf16.msra.mxu0 %v1046
    %1095 = vmatpush.bf16.msra.mxu0 %v1044
    %1096 = vmatpush.bf16.msra.mxu0 %v1042
    %1097 = vmatpush.bf16.msra.mxu0 %v1040
    %1098 = vmatmul.bf16.gmra.mxu0 %v980
    %v1099 = vpop.f32.mrf.mxu0
    %v1100 = vadd.f32 0.0, %v1099
    %v1101 = vpop.f32.mrf.mxu0
    %v1102 = vadd.f32 0.0, %v1101
    %1103 = vmatmul.bf16.gmra.mxu0 %v988
    %v1104 = vpop.f32.mrf.mxu0
    %v1105 = vadd.f32 0.0, %v1104
    %v1106 = vpop.f32.mrf.mxu0
    %v1107 = vadd.f32 0.0, %v1106
    %1108 = vdwg.mxu0
    %v1113 = vunpack.c.l.b16 %v914
    %v1114 = vunpack.c.l.b16 %v915
    %v1115 = vunpack.c.l.b16 %v916
    %v1116 = vunpack.c.l.b16 %v917
    %v1117 = vpack.c.b16 %v1114, %v1113
    %v1118 = vpack.c.b16 %v1116, %v1115
    %v1137 = vunpack.c.l.b16 %v918
    %v1138 = vunpack.c.h.b16 %v918
    %v1139 = vunpack.c.l.b16 %v919
    %v1140 = vunpack.c.h.b16 %v919
    %v1141 = vunpack.c.l.b16 %v920
    %v1142 = vunpack.c.h.b16 %v920
    %v1143 = vunpack.c.l.b16 %v921
    %v1144 = vunpack.c.h.b16 %v921
    %v1145 = vunpack.c.l.b16 %v922
    %v1146 = vunpack.c.h.b16 %v922
    %v1147 = vunpack.c.l.b16 %v923
    %v1148 = vunpack.c.h.b16 %v923
    %v1149 = vunpack.c.l.b16 %v924
    %v1150 = vunpack.c.h.b16 %v924
    %v1151 = vunpack.c.l.b16 %v925
    %v1152 = vunpack.c.h.b16 %v925
    %v1153 = vunpack.c.l.b16 %v926
    %v1154 = vunpack.c.h.b16 %v926
    %v1155 = vunpack.c.l.b16 %v927
    %v1156 = vunpack.c.h.b16 %v927
    %v1157 = vunpack.c.l.b16 %v928
    %v1158 = vunpack.c.h.b16 %v928
    %v1159 = vunpack.c.l.b16 %v929
    %v1160 = vunpack.c.h.b16 %v929
    %v1161 = vunpack.c.l.b16 %v930
    %v1162 = vunpack.c.h.b16 %v930
    %v1163 = vunpack.c.l.b16 %v931
    %v1164 = vunpack.c.h.b16 %v931
    %v1165 = vunpack.c.l.b16 %v932
    %v1166 = vunpack.c.h.b16 %v932
    %v1167 = vunpack.c.l.b16 %v933
    %v1168 = vunpack.c.h.b16 %v933
    %v1169 = vpack.c.b16 %v1139, %v1137
    %v1170 = vpack.c.b16 %v1140, %v1138
    %v1171 = vpack.c.b16 %v1143, %v1141
    %v1172 = vpack.c.b16 %v1144, %v1142
    %v1173 = vpack.c.b16 %v1147, %v1145
    %v1174 = vpack.c.b16 %v1148, %v1146
    %v1175 = vpack.c.b16 %v1151, %v1149
    %v1176 = vpack.c.b16 %v1152, %v1150
    %v1177 = vpack.c.b16 %v1155, %v1153
    %v1178 = vpack.c.b16 %v1156, %v1154
    %v1179 = vpack.c.b16 %v1159, %v1157
    %v1180 = vpack.c.b16 %v1160, %v1158
    %v1181 = vpack.c.b16 %v1163, %v1161
    %v1182 = vpack.c.b16 %v1164, %v1162
    %v1183 = vpack.c.b16 %v1167, %v1165
    %v1184 = vpack.c.b16 %v1168, %v1166
    %1201 = vmatpush.bf16.msra.mxu0 %v1183
    %1202 = vmatpush.bf16.msra.mxu0 %v1181
    %1203 = vmatpush.bf16.msra.mxu0 %v1179
    %1204 = vmatpush.bf16.msra.mxu0 %v1177
    %1205 = vmatpush.bf16.msra.mxu0 %v1175
    %1206 = vmatpush.bf16.msra.mxu0 %v1173
    %1207 = vmatpush.bf16.msra.mxu0 %v1171
    %1208 = vmatpush.bf16.msra.mxu0 %v1169
    %1209 = vmatmul.bf16.gmra.mxu0 %v1117
    %v1210 = vpop.f32.mrf.mxu0
    %v1211 = vadd.f32 %v1081, %v1210
    %v1212 = vpop.f32.mrf.mxu0
    %v1213 = vadd.f32 %v1083, %v1212
    %1214 = vmatmul.bf16.gmra.mxu0 %v1118
    %v1215 = vpop.f32.mrf.mxu0
    %v1216 = vadd.f32 %v1086, %v1215
    %v1217 = vpop.f32.mrf.mxu0
    %v1218 = vadd.f32 %v1088, %v1217
    %1219 = vdwg.mxu0
    %1220 = vmatpush.bf16.msra.mxu0 %v1184
    %1221 = vmatpush.bf16.msra.mxu0 %v1182
    %1222 = vmatpush.bf16.msra.mxu0 %v1180
    %1223 = vmatpush.bf16.msra.mxu0 %v1178
    %1224 = vmatpush.bf16.msra.mxu0 %v1176
    %1225 = vmatpush.bf16.msra.mxu0 %v1174
    %1226 = vmatpush.bf16.msra.mxu0 %v1172
    %1227 = vmatpush.bf16.msra.mxu0 %v1170
    %1228 = vmatmul.bf16.gmra.mxu0 %v1117
    %v1229 = vpop.f32.mrf.mxu0
    %v1230 = vadd.f32 %v1100, %v1229
    %v1231 = vpop.f32.mrf.mxu0
    %v1232 = vadd.f32 %v1102, %v1231
    %1233 = vmatmul.bf16.gmra.mxu0 %v1118
    %v1234 = vpop.f32.mrf.mxu0
    %v1235 = vadd.f32 %v1105, %v1234
    %v1236 = vpop.f32.mrf.mxu0
    %v1237 = vadd.f32 %v1107, %v1236
    %1238 = vdwg.mxu0
    %v1239 = vld [vmem:[#allocation2] sm:$0xe]
    %s1240 = scalar_lea.vmem [#allocation5], 256
    %v1241 = vld [vmem:[%s1240] sm:$0xff]
    %v1242 = vld [vmem:[%s1240 + $0x8] sm:$0xff]
    %v1243 = vld [vmem:[%s1240 + $0x10] sm:$0xff]
    %v1244 = vld [vmem:[%s1240 + $0x18] sm:$0xff]
    %v1245 = vld [vmem:[%s1240 + $0x20] sm:$0xff]
    %v1246 = vld [vmem:[%s1240 + $0x28] sm:$0xff]
    %v1247 = vld [vmem:[%s1240 + $0x30] sm:$0xff]
    %v1248 = vld [vmem:[%s1240 + $0x38] sm:$0xff]
    %v1249 = vld [vmem:[%s1240 + $0x40] sm:$0xff]
    %v1250 = vld [vmem:[%s1240 + $0x48] sm:$0xff]
    %v1251 = vld [vmem:[%s1240 + $0x50] sm:$0xff]
    %v1252 = vld [vmem:[%s1240 + $0x58] sm:$0xff]
    %v1253 = vld [vmem:[%s1240 + $0x60] sm:$0xff]
    %v1254 = vld [vmem:[%s1240 + $0x68] sm:$0xff]
    %v1255 = vld [vmem:[%s1240 + $0x70] sm:$0xff]
    %v1256 = vld [vmem:[%s1240 + $0x78] sm:$0xff]
    %v1258 = vunpack.c.l.b16 %v1239
    %v1259 = vpack.c.b16 %v962, %v1258
    %v1260 = vrot.slane %v1259, 1
    %v1261 = vrot.slane %v967, 1
    %v1262 = vsel %vm362, %v1260, %v1261
    %v1263 = vrot.slane %v968, 1
    %v1264 = vsel %vm362, %v1261, %v1263
    %v1283 = vunpack.c.l.b16 %v1241
    %v1284 = vunpack.c.h.b16 %v1241
    %v1285 = vunpack.c.l.b16 %v1242
    %v1286 = vunpack.c.h.b16 %v1242
    %v1287 = vunpack.c.l.b16 %v1243
    %v1288 = vunpack.c.h.b16 %v1243
    %v1289 = vunpack.c.l.b16 %v1244
    %v1290 = vunpack.c.h.b16 %v1244
    %v1291 = vunpack.c.l.b16 %v1245
    %v1292 = vunpack.c.h.b16 %v1245
    %v1293 = vunpack.c.l.b16 %v1246
    %v1294 = vunpack.c.h.b16 %v1246
    %v1295 = vunpack.c.l.b16 %v1247
    %v1296 = vunpack.c.h.b16 %v1247
    %v1297 = vunpack.c.l.b16 %v1248
    %v1298 = vunpack.c.h.b16 %v1248
    %v1299 = vunpack.c.l.b16 %v1249
    %v1300 = vunpack.c.h.b16 %v1249
    %v1301 = vunpack.c.l.b16 %v1250
    %v1302 = vunpack.c.h.b16 %v1250
    %v1303 = vunpack.c.l.b16 %v1251
    %v1304 = vunpack.c.h.b16 %v1251
    %v1305 = vunpack.c.l.b16 %v1252
    %v1306 = vunpack.c.h.b16 %v1252
    %v1307 = vunpack.c.l.b16 %v1253
    %v1308 = vunpack.c.h.b16 %v1253
    %v1309 = vunpack.c.l.b16 %v1254
    %v1310 = vunpack.c.h.b16 %v1254
    %v1311 = vunpack.c.l.b16 %v1255
    %v1312 = vunpack.c.h.b16 %v1255
    %v1313 = vunpack.c.l.b16 %v1256
    %v1314 = vunpack.c.h.b16 %v1256
    %v1315 = vpack.c.b16 %v1285, %v1283
    %v1316 = vpack.c.b16 %v1286, %v1284
    %v1317 = vpack.c.b16 %v1289, %v1287
    %v1318 = vpack.c.b16 %v1290, %v1288
    %v1319 = vpack.c.b16 %v1293, %v1291
    %v1320 = vpack.c.b16 %v1294, %v1292
    %v1321 = vpack.c.b16 %v1297, %v1295
    %v1322 = vpack.c.b16 %v1298, %v1296
    %v1323 = vpack.c.b16 %v1301, %v1299
    %v1324 = vpack.c.b16 %v1302, %v1300
    %v1325 = vpack.c.b16 %v1305, %v1303
    %v1326 = vpack.c.b16 %v1306, %v1304
    %v1327 = vpack.c.b16 %v1309, %v1307
    %v1328 = vpack.c.b16 %v1310, %v1308
    %v1329 = vpack.c.b16 %v1313, %v1311
    %v1330 = vpack.c.b16 %v1314, %v1312
    %1347 = vmatpush.bf16.msra.mxu0 %v1329
    %1348 = vmatpush.bf16.msra.mxu0 %v1327
    %1349 = vmatpush.bf16.msra.mxu0 %v1325
    %1350 = vmatpush.bf16.msra.mxu0 %v1323
    %1351 = vmatpush.bf16.msra.mxu0 %v1321
    %1352 = vmatpush.bf16.msra.mxu0 %v1319
    %1353 = vmatpush.bf16.msra.mxu0 %v1317
    %1354 = vmatpush.bf16.msra.mxu0 %v1315
    %1355 = vmatmul.bf16.gmra.mxu0 %v1262
    %v1356 = vpop.f32.mrf.mxu0
    %v1357 = vadd.f32 0.0, %v1356
    %v1358 = vpop.f32.mrf.mxu0
    %v1359 = vadd.f32 0.0, %v1358
    %1360 = vmatmul.bf16.gmra.mxu0 %v1264
    %v1361 = vpop.f32.mrf.mxu0
    %v1362 = vadd.f32 0.0, %v1361
    %v1363 = vpop.f32.mrf.mxu0
    %v1364 = vadd.f32 0.0, %v1363
    %1365 = vdwg.mxu0
    %1366 = vmatpush.bf16.msra.mxu0 %v1330
    %1367 = vmatpush.bf16.msra.mxu0 %v1328
    %1368 = vmatpush.bf16.msra.mxu0 %v1326
    %1369 = vmatpush.bf16.msra.mxu0 %v1324
    %1370 = vmatpush.bf16.msra.mxu0 %v1322
    %1371 = vmatpush.bf16.msra.mxu0 %v1320
    %1372 = vmatpush.bf16.msra.mxu0 %v1318
    %1373 = vmatpush.bf16.msra.mxu0 %v1316
    %1374 = vmatmul.bf16.gmra.mxu0 %v1262
    %v1375 = vpop.f32.mrf.mxu0
    %v1376 = vadd.f32 0.0, %v1375
    %v1377 = vpop.f32.mrf.mxu0
    %v1378 = vadd.f32 0.0, %v1377
    %1379 = vmatmul.bf16.gmra.mxu0 %v1264
    %v1380 = vpop.f32.mrf.mxu0
    %v1381 = vadd.f32 0.0, %v1380
    %v1382 = vpop.f32.mrf.mxu0
    %v1383 = vadd.f32 0.0, %v1382
    %1384 = vdwg.mxu0
    %v1385 = vadd.f32 %v1211, %v1357
    %v1386 = vadd.f32 %v1230, %v1376
    %v1387 = vadd.f32 %v1213, %v1359
    %v1388 = vadd.f32 %v1232, %v1378
    %v1389 = vadd.f32 %v1216, %v1362
    %v1390 = vadd.f32 %v1235, %v1381
    %v1391 = vadd.f32 %v1218, %v1364
    %v1392 = vadd.f32 %v1237, %v1383
    %v1393 = vld [vmem:[#allocation2 + $0x10] sm:$0x3]
    %s1394 = scalar_lea.vmem [#allocation5], 384
    %v1395 = vld [vmem:[%s1394] sm:$0xff]
    %v1396 = vld [vmem:[%s1394 + $0x8] sm:$0xff]
    %v1397 = vld [vmem:[%s1394 + $0x10] sm:$0xff]
    %v1398 = vld [vmem:[%s1394 + $0x18] sm:$0xff]
    %v1399 = vld [vmem:[%s1394 + $0x20] sm:$0xff]
    %v1400 = vld [vmem:[%s1394 + $0x28] sm:$0xff]
    %v1401 = vld [vmem:[%s1394 + $0x30] sm:$0xff]
    %v1402 = vld [vmem:[%s1394 + $0x38] sm:$0xff]
    %v1403 = vld [vmem:[%s1394 + $0x40] sm:$0xff]
    %v1404 = vld [vmem:[%s1394 + $0x48] sm:$0xff]
    %v1405 = vld [vmem:[%s1394 + $0x50] sm:$0xff]
    %v1406 = vld [vmem:[%s1394 + $0x58] sm:$0xff]
    %v1407 = vld [vmem:[%s1394 + $0x60] sm:$0xff]
    %v1408 = vld [vmem:[%s1394 + $0x68] sm:$0xff]
    %v1409 = vld [vmem:[%s1394 + $0x70] sm:$0xff]
    %v1410 = vld [vmem:[%s1394 + $0x78] sm:$0xff]
    %v1412 = vunpack.c.l.b16 %v1393
    %v1413 = vpack.c.b16 %v1412, %v1412
    %v1415 = vshrl.u32 %v1259, 16
    %v1417 = vrot.slane %v1415, 1
    %v1418 = vshll.u32 %v1259, 16
    %v1420 = vrot.slane %v1418, 2
    %v1421 = vor.u32 %v1417, %v1420
    %v1422 = vrot.slane %v981, 1
    %v1423 = vrot.slane %v977, 2
    %v1424 = vor.u32 %v1422, %v1423
    %v1425 = vsel %vm487, %v1421, %v1424
    %v1427 = vshrl.u32 %v1413, 16
    %v1429 = vrot.slane %v1427, 1
    %v1430 = vshll.u32 %v1413, 16
    %v1432 = vrot.slane %v1430, 2
    %v1433 = vor.u32 %v1429, %v1432
    %v1434 = vsel %vm487, %v1424, %v1433
    %v1453 = vunpack.c.l.b16 %v1395
    %v1454 = vunpack.c.h.b16 %v1395
    %v1455 = vunpack.c.l.b16 %v1396
    %v1456 = vunpack.c.h.b16 %v1396
    %v1457 = vunpack.c.l.b16 %v1397
    %v1458 = vunpack.c.h.b16 %v1397
    %v1459 = vunpack.c.l.b16 %v1398
    %v1460 = vunpack.c.h.b16 %v1398
    %v1461 = vunpack.c.l.b16 %v1399
    %v1462 = vunpack.c.h.b16 %v1399
    %v1463 = vunpack.c.l.b16 %v1400
    %v1464 = vunpack.c.h.b16 %v1400
    %v1465 = vunpack.c.l.b16 %v1401
    %v1466 = vunpack.c.h.b16 %v1401
    %v1467 = vunpack.c.l.b16 %v1402
    %v1468 = vunpack.c.h.b16 %v1402
    %v1469 = vunpack.c.l.b16 %v1403
    %v1470 = vunpack.c.h.b16 %v1403
    %v1471 = vunpack.c.l.b16 %v1404
    %v1472 = vunpack.c.h.b16 %v1404
    %v1473 = vunpack.c.l.b16 %v1405
    %v1474 = vunpack.c.h.b16 %v1405
    %v1475 = vunpack.c.l.b16 %v1406
    %v1476 = vunpack.c.h.b16 %v1406
    %v1477 = vunpack.c.l.b16 %v1407
    %v1478 = vunpack.c.h.b16 %v1407
    %v1479 = vunpack.c.l.b16 %v1408
    %v1480 = vunpack.c.h.b16 %v1408
    %v1481 = vunpack.c.l.b16 %v1409
    %v1482 = vunpack.c.h.b16 %v1409
    %v1483 = vunpack.c.l.b16 %v1410
    %v1484 = vunpack.c.h.b16 %v1410
    %v1485 = vpack.c.b16 %v1455, %v1453
    %v1486 = vpack.c.b16 %v1456, %v1454
    %v1487 = vpack.c.b16 %v1459, %v1457
    %v1488 = vpack.c.b16 %v1460, %v1458
    %v1489 = vpack.c.b16 %v1463, %v1461
    %v1490 = vpack.c.b16 %v1464, %v1462
    %v1491 = vpack.c.b16 %v1467, %v1465
    %v1492 = vpack.c.b16 %v1468, %v1466
    %v1493 = vpack.c.b16 %v1471, %v1469
    %v1494 = vpack.c.b16 %v1472, %v1470
    %v1495 = vpack.c.b16 %v1475, %v1473
    %v1496 = vpack.c.b16 %v1476, %v1474
    %v1497 = vpack.c.b16 %v1479, %v1477
    %v1498 = vpack.c.b16 %v1480, %v1478
    %v1499 = vpack.c.b16 %v1483, %v1481
    %v1500 = vpack.c.b16 %v1484, %v1482
    %1517 = vmatpush.bf16.msra.mxu0 %v1499
    %1518 = vmatpush.bf16.msra.mxu0 %v1497
    %1519 = vmatpush.bf16.msra.mxu0 %v1495
    %1520 = vmatpush.bf16.msra.mxu0 %v1493
    %1521 = vmatpush.bf16.msra.mxu0 %v1491
    %1522 = vmatpush.bf16.msra.mxu0 %v1489
    %1523 = vmatpush.bf16.msra.mxu0 %v1487
    %1524 = vmatpush.bf16.msra.mxu0 %v1485
    %1525 = vmatmul.bf16.gmra.mxu0 %v1425
    %v1526 = vpop.f32.mrf.mxu0
    %v1527 = vadd.f32 0.0, %v1526
    %v1528 = vpop.f32.mrf.mxu0
    %v1529 = vadd.f32 0.0, %v1528
    %1530 = vmatmul.bf16.gmra.mxu0 %v1434
    %v1531 = vpop.f32.mrf.mxu0
    %v1532 = vadd.f32 0.0, %v1531
    %v1533 = vpop.f32.mrf.mxu0
    %v1534 = vadd.f32 0.0, %v1533
    %1535 = vdwg.mxu0
    %1536 = vmatpush.bf16.msra.mxu0 %v1500
    %1537 = vmatpush.bf16.msra.mxu0 %v1498
    %1538 = vmatpush.bf16.msra.mxu0 %v1496
    %1539 = vmatpush.bf16.msra.mxu0 %v1494
    %1540 = vmatpush.bf16.msra.mxu0 %v1492
    %1541 = vmatpush.bf16.msra.mxu0 %v1490
    %1542 = vmatpush.bf16.msra.mxu0 %v1488
    %1543 = vmatpush.bf16.msra.mxu0 %v1486
    %1544 = vmatmul.bf16.gmra.mxu0 %v1425
    %v1545 = vpop.f32.mrf.mxu0
    %v1546 = vadd.f32 0.0, %v1545
    %v1547 = vpop.f32.mrf.mxu0
    %v1548 = vadd.f32 0.0, %v1547
    %1549 = vmatmul.bf16.gmra.mxu0 %v1434
    %v1550 = vpop.f32.mrf.mxu0
    %v1551 = vadd.f32 0.0, %v1550
    %v1552 = vpop.f32.mrf.mxu0
    %v1553 = vadd.f32 0.0, %v1552
    %1554 = vdwg.mxu0
    %v1555 = vadd.f32 %v1385, %v1527
    %v1556 = vadd.f32 %v1386, %v1546
    %v1557 = vadd.f32 %v1387, %v1529
    %v1558 = vadd.f32 %v1388, %v1548
    %v1559 = vadd.f32 %v1389, %v1532
    %v1560 = vadd.f32 %v1390, %v1551
    %v1561 = vadd.f32 %v1391, %v1534
    %v1562 = vadd.f32 %v1392, %v1553
    %v1563 = vld [vmem:[#allocation2] sm:$0xc]
    %s1564 = scalar_lea.vmem [#allocation5], 512
    %v1565 = vld [vmem:[%s1564] sm:$0xff]
    %v1566 = vld [vmem:[%s1564 + $0x8] sm:$0xff]
    %v1567 = vld [vmem:[%s1564 + $0x10] sm:$0xff]
    %v1568 = vld [vmem:[%s1564 + $0x18] sm:$0xff]
    %v1569 = vld [vmem:[%s1564 + $0x20] sm:$0xff]
    %v1570 = vld [vmem:[%s1564 + $0x28] sm:$0xff]
    %v1571 = vld [vmem:[%s1564 + $0x30] sm:$0xff]
    %v1572 = vld [vmem:[%s1564 + $0x38] sm:$0xff]
    %v1573 = vld [vmem:[%s1564 + $0x40] sm:$0xff]
    %v1574 = vld [vmem:[%s1564 + $0x48] sm:$0xff]
    %v1575 = vld [vmem:[%s1564 + $0x50] sm:$0xff]
    %v1576 = vld [vmem:[%s1564 + $0x58] sm:$0xff]
    %v1577 = vld [vmem:[%s1564 + $0x60] sm:$0xff]
    %v1578 = vld [vmem:[%s1564 + $0x68] sm:$0xff]
    %v1579 = vld [vmem:[%s1564 + $0x70] sm:$0xff]
    %v1580 = vld [vmem:[%s1564 + $0x78] sm:$0xff]
    %v1582 = vunpack.c.l.b16 %v1563
    %v1583 = vpack.c.b16 %v962, %v1582
    %v1584 = vrot.slane %v1583, 2
    %v1585 = vrot.slane %v967, 2
    %v1586 = vsel %vm632, %v1584, %v1585
    %v1587 = vrot.slane %v1413, 2
    %v1588 = vsel %vm632, %v1585, %v1587
    %v1607 = vunpack.c.l.b16 %v1565
    %v1608 = vunpack.c.h.b16 %v1565
    %v1609 = vunpack.c.l.b16 %v1566
    %v1610 = vunpack.c.h.b16 %v1566
    %v1611 = vunpack.c.l.b16 %v1567
    %v1612 = vunpack.c.h.b16 %v1567
    %v1613 = vunpack.c.l.b16 %v1568
    %v1614 = vunpack.c.h.b16 %v1568
    %v1615 = vunpack.c.l.b16 %v1569
    %v1616 = vunpack.c.h.b16 %v1569
    %v1617 = vunpack.c.l.b16 %v1570
    %v1618 = vunpack.c.h.b16 %v1570
    %v1619 = vunpack.c.l.b16 %v1571
    %v1620 = vunpack.c.h.b16 %v1571
    %v1621 = vunpack.c.l.b16 %v1572
    %v1622 = vunpack.c.h.b16 %v1572
    %v1623 = vunpack.c.l.b16 %v1573
    %v1624 = vunpack.c.h.b16 %v1573
    %v1625 = vunpack.c.l.b16 %v1574
    %v1626 = vunpack.c.h.b16 %v1574
    %v1627 = vunpack.c.l.b16 %v1575
    %v1628 = vunpack.c.h.b16 %v1575
    %v1629 = vunpack.c.l.b16 %v1576
    %v1630 = vunpack.c.h.b16 %v1576
    %v1631 = vunpack.c.l.b16 %v1577
    %v1632 = vunpack.c.h.b16 %v1577
    %v1633 = vunpack.c.l.b16 %v1578
    %v1634 = vunpack.c.h.b16 %v1578
    %v1635 = vunpack.c.l.b16 %v1579
    %v1636 = vunpack.c.h.b16 %v1579
    %v1637 = vunpack.c.l.b16 %v1580
    %v1638 = vunpack.c.h.b16 %v1580
    %v1639 = vpack.c.b16 %v1609, %v1607
    %v1640 = vpack.c.b16 %v1610, %v1608
    %v1641 = vpack.c.b16 %v1613, %v1611
    %v1642 = vpack.c.b16 %v1614, %v1612
    %v1643 = vpack.c.b16 %v1617, %v1615
    %v1644 = vpack.c.b16 %v1618, %v1616
    %v1645 = vpack.c.b16 %v1621, %v1619
    %v1646 = vpack.c.b16 %v1622, %v1620
    %v1647 = vpack.c.b16 %v1625, %v1623
    %v1648 = vpack.c.b16 %v1626, %v1624
    %v1649 = vpack.c.b16 %v1629, %v1627
    %v1650 = vpack.c.b16 %v1630, %v1628
    %v1651 = vpack.c.b16 %v1633, %v1631
    %v1652 = vpack.c.b16 %v1634, %v1632
    %v1653 = vpack.c.b16 %v1637, %v1635
    %v1654 = vpack.c.b16 %v1638, %v1636
    %1671 = vmatpush.bf16.msra.mxu0 %v1653
    %1672 = vmatpush.bf16.msra.mxu0 %v1651
    %1673 = vmatpush.bf16.msra.mxu0 %v1649
    %1674 = vmatpush.bf16.msra.mxu0 %v1647
    %1675 = vmatpush.bf16.msra.mxu0 %v1645
    %1676 = vmatpush.bf16.msra.mxu0 %v1643
    %1677 = vmatpush.bf16.msra.mxu0 %v1641
    %1678 = vmatpush.bf16.msra.mxu0 %v1639
    %1679 = vmatmul.bf16.gmra.mxu0 %v1586
    %v1680 = vpop.f32.mrf.mxu0
    %v1681 = vadd.f32 0.0, %v1680
    %v1682 = vpop.f32.mrf.mxu0
    %v1683 = vadd.f32 0.0, %v1682
    %1684 = vmatmul.bf16.gmra.mxu0 %v1588
    %v1685 = vpop.f32.mrf.mxu0
    %v1686 = vadd.f32 0.0, %v1685
    %v1687 = vpop.f32.mrf.mxu0
    %v1688 = vadd.f32 0.0, %v1687
    %1689 = vdwg.mxu0
    %1690 = vmatpush.bf16.msra.mxu0 %v1654
    %1691 = vmatpush.bf16.msra.mxu0 %v1652
    %1692 = vmatpush.bf16.msra.mxu0 %v1650
    %1693 = vmatpush.bf16.msra.mxu0 %v1648
    %1694 = vmatpush.bf16.msra.mxu0 %v1646
    %1695 = vmatpush.bf16.msra.mxu0 %v1644
    %1696 = vmatpush.bf16.msra.mxu0 %v1642
    %1697 = vmatpush.bf16.msra.mxu0 %v1640
    %1698 = vmatmul.bf16.gmra.mxu0 %v1586
    %v1699 = vpop.f32.mrf.mxu0
    %v1700 = vadd.f32 0.0, %v1699
    %v1701 = vpop.f32.mrf.mxu0
    %v1702 = vadd.f32 0.0, %v1701
    %1703 = vmatmul.bf16.gmra.mxu0 %v1588
    %v1704 = vpop.f32.mrf.mxu0
    %v1705 = vadd.f32 0.0, %v1704
    %v1706 = vpop.f32.mrf.mxu0
    %v1707 = vadd.f32 0.0, %v1706
    %1708 = vdwg.mxu0
    %v1709 = vadd.f32 %v1555, %v1681
    %v1710 = vadd.f32 %v1556, %v1700
    %v1711 = vadd.f32 %v1557, %v1683
    %v1712 = vadd.f32 %v1558, %v1702
    %v1713 = vadd.f32 %v1559, %v1686
    %v1714 = vadd.f32 %v1560, %v1705
    %v1715 = vadd.f32 %v1561, %v1688
    %v1716 = vadd.f32 %v1562, %v1707
    %v1717 = vld [vmem:[%s6] sm:$0x3]
    %v1719 = vperm.slane %v1717, 0
    %v1720 = vperm.slane %v1717, 1
    %v1723 = vadd.f32 %v1709, %v1719
    %v1724 = vadd.f32 %v1710, %v1720
    %v1725 = vadd.f32 %v1711, %v1719
    %v1726 = vadd.f32 %v1712, %v1720
    %v1727 = vadd.f32 %v1713, %v1719
    %v1728 = vadd.f32 %v1714, %v1720
    %v1729 = vadd.f32 %v1715, %v1719
    %v1730 = vadd.f32 %v1716, %v1720
    %v1731 = vmax.f32 %v1723, 0.0
    %v1732 = vmax.f32 %v1724, 0.0
    %v1733 = vmax.f32 %v1725, 0.0
    %v1734 = vmax.f32 %v1726, 0.0
    %v1735 = vmax.f32 %v1727, 0.0
    %v1736 = vmax.f32 %v1728, 0.0
    %v1737 = vmax.f32 %v1729, 0.0
    %v1738 = vmax.f32 %v1730, 0.0
    %v1739 = vmax.f32 %v1731, %v1732
    %v1740 = vmax.f32 %v1733, %v1734
    %v1741 = vmax.f32 %v1735, %v1736
    %v1742 = vmax.f32 %v1737, %v1738
    %v1743 = vpack.c.bf16 %v1740, %v1739
    %v1744 = vpack.c.bf16 %v1742, %v1741
    %v1745 = vld [vmem:[%s7] sm:$0xf]
    %v1746 = vld [vmem:[%s7 + $0x4] sm:$0xf]
    %v1747 = vld [vmem:[%s7 + $0x8] sm:$0xf]
    %v1748 = vld [vmem:[%s7 + $0xc] sm:$0xf]
    %v1749 = vld [vmem:[%s7 + $0x10] sm:$0xf]
    %v1755 = vunpack.c.l.b16 %v1745
    %v1756 = vunpack.c.l.b16 %v1746
    %v1757 = vunpack.c.l.b16 %v1747
    %v1758 = vunpack.c.l.b16 %v1748
    %v1759 = vunpack.c.l.b16 %v1749
    %v1760 = vpack.c.b16 %v1756, %v1755
    %v1761 = vpack.c.b16 %v1758, %v1757
    %v1762 = vpack.c.b16 %v1759, %v1759
    %v1764 = vsel %vm196, %v1760, 0
    %v1767 = vsel %vm196, %v1761, 0
    %v1770 = vsel %vm196, %v1762, 0
    %1772 = vmatpush.bf16.msra.mxu0 0
    %1773 = vmatpush.bf16.msra.mxu0 0
    %1774 = vmatpush.bf16.msra.mxu0 0
    %1775 = vmatpush.bf16.msra.mxu0 0
    %1776 = vmatpush.bf16.msra.mxu0 0
    %1777 = vmatpush.bf16.msra.mxu0 0
    %1778 = vmatpush.bf16.msra.mxu0 %v1744
    %1779 = vmatpush.bf16.msra.mxu0 %v1743
    %1780 = vmatmul.bf16.gmra.mxu0 %v1764
    %v1781 = vpop.f32.mrf.mxu0
    %v1782 = vadd.f32 0.0, %v1781
    %v1783 = vpop.f32.mrf.mxu0
    %v1784 = vadd.f32 0.0, %v1783
    %1785 = vmatmul.bf16.gmra.mxu0 %v1767
    %v1786 = vpop.f32.mrf.mxu0
    %v1787 = vadd.f32 0.0, %v1786
    %v1788 = vpop.f32.mrf.mxu0
    %v1789 = vadd.f32 0.0, %v1788
    %1790 = vmatmul.bf16.gmra.mxu0 %v1770
    %v1791 = vpop.f32.mrf.mxu0
    %v1792 = vadd.f32 0.0, %v1791
    %v1793 = vpop.f32.mrf.mxu0
    %1794 = vdwg.mxu0
    %v1795 = vld [vmem:[%s8] sm:$0xf]
    %v1796 = vld [vmem:[%s8 + $0x4] sm:$0xf]
    %v1797 = vld [vmem:[%s8 + $0x8] sm:$0xf]
    %v1798 = vld [vmem:[%s8 + $0xc] sm:$0xf]
    %v1799 = vld [vmem:[%s8 + $0x10] sm:$0xf]
    %v1805 = vunpack.c.l.b16 %v1795
    %v1806 = vunpack.c.l.b16 %v1796
    %v1807 = vunpack.c.l.b16 %v1797
    %v1808 = vunpack.c.l.b16 %v1798
    %v1809 = vunpack.c.l.b16 %v1799
    %v1810 = vpack.c.b16 %v1806, %v1805
    %v1811 = vpack.c.b16 %v1808, %v1807
    %v1812 = vpack.c.b16 %v1809, %v1809
    %v1814 = vsel %vm196, %v1810, 0
    %v1817 = vsel %vm196, %v1811, 0
    %v1820 = vsel %vm196, %v1812, 0
    %1822 = vmatpush.bf16.msra.mxu0 0
    %1823 = vmatpush.bf16.msra.mxu0 0
    %1824 = vmatpush.bf16.msra.mxu0 0
    %1825 = vmatpush.bf16.msra.mxu0 0
    %1826 = vmatpush.bf16.msra.mxu0 0
    %1827 = vmatpush.bf16.msra.mxu0 0
    %1828 = vmatpush.bf16.msra.mxu0 %v1744
    %1829 = vmatpush.bf16.msra.mxu0 %v1743
    %1830 = vmatmul.bf16.gmra.mxu0 %v1814
    %v1831 = vpop.f32.mrf.mxu0
    %v1832 = vadd.f32 0.0, %v1831
    %v1833 = vpop.f32.mrf.mxu0
    %v1834 = vadd.f32 0.0, %v1833
    %1835 = vmatmul.bf16.gmra.mxu0 %v1817
    %v1836 = vpop.f32.mrf.mxu0
    %v1837 = vadd.f32 0.0, %v1836
    %v1838 = vpop.f32.mrf.mxu0
    %v1839 = vadd.f32 0.0, %v1838
    %1840 = vmatmul.bf16.gmra.mxu0 %v1820
    %v1841 = vpop.f32.mrf.mxu0
    %v1842 = vadd.f32 0.0, %v1841
    %v1843 = vpop.f32.mrf.mxu0
    %1844 = vdwg.mxu0
    %v1845 = vmax.f32 %v1782, %v1832
    %v1846 = vmax.f32 %v1784, %v1834
    %v1847 = vmax.f32 %v1787, %v1837
    %v1848 = vmax.f32 %v1789, %v1839
    %v1849 = vmax.f32 %v1792, %v1842
    %v1850 = vpack.c.bf16 %v1845, %v1845
    %v1851 = vpack.c.bf16 %v1846, %v1846
    %v1852 = vpack.c.bf16 %v1847, %v1847
    %v1853 = vpack.c.bf16 %v1848, %v1848
    %v1854 = vpack.c.bf16 %v1849, %v1849
    %v1855 = vld [vmem:[#allocation7] sm:$0xf]
    %v1856 = vld [vmem:[#allocation7 + $0x4] sm:$0xf]
    %v1857 = vld [vmem:[#allocation7 + $0x8] sm:$0xf]
    %v1858 = vld [vmem:[#allocation7 + $0xc] sm:$0xf]
    %v1859 = vld [vmem:[#allocation7 + $0x10] sm:$0xf]
    %v1860 = vld [vmem:[#allocation7 + $0x14] sm:$0xf]
    %v1861 = vld [vmem:[#allocation7 + $0x18] sm:$0xf]
    %v1862 = vld [vmem:[#allocation7 + $0x1c] sm:$0xf]
    %v1863 = vld [vmem:[#allocation7 + $0x20] sm:$0xf]
    %v1864 = vld [vmem:[#allocation7 + $0x24] sm:$0xf]
    %v1865 = vld [vmem:[#allocation7 + $0x28] sm:$0xf]
    %v1866 = vld [vmem:[#allocation7 + $0x2c] sm:$0xf]
    %v1867 = vld [vmem:[#allocation7 + $0x30] sm:$0xf]
    %v1868 = vld [vmem:[#allocation7 + $0x34] sm:$0xf]
    %v1869 = vld [vmem:[#allocation7 + $0x38] sm:$0xf]
    %v1870 = vld [vmem:[#allocation7 + $0x3c] sm:$0xf]
    %s1871 = scalar_lea.vmem [#allocation7], 64
    %v1872 = vld [vmem:[%s1871] sm:$0xf]
    %v1873 = vld [vmem:[%s1871 + $0x4] sm:$0xf]
    %v1874 = vld [vmem:[%s1871 + $0x8] sm:$0xf]
    %v1875 = vld [vmem:[%s1871 + $0xc] sm:$0xf]
    %v1876 = vld [vmem:[%s1871 + $0x10] sm:$0xf]
    %v1877 = vld [vmem:[%s1871 + $0x14] sm:$0xf]
    %v1878 = vld [vmem:[%s1871 + $0x18] sm:$0xf]
    %v1879 = vld [vmem:[%s1871 + $0x1c] sm:$0xf]
    %v1880 = vld [vmem:[%s1871 + $0x20] sm:$0xf]
    %v1881 = vld [vmem:[%s1871 + $0x24] sm:$0xf]
    %v1882 = vld [vmem:[%s1871 + $0x28] sm:$0xf]
    %v1883 = vld [vmem:[%s1871 + $0x2c] sm:$0xf]
    %v1884 = vld [vmem:[%s1871 + $0x30] sm:$0xf]
    %v1885 = vld [vmem:[%s1871 + $0x34] sm:$0xf]
    %v1886 = vld [vmem:[%s1871 + $0x38] sm:$0xf]
    %v1887 = vld [vmem:[%s1871 + $0x3c] sm:$0xf]
    %v1904 = vunpack.c.l.b16 %v1872
    %v1905 = vunpack.c.l.b16 %v1873
    %v1906 = vunpack.c.l.b16 %v1874
    %v1907 = vunpack.c.l.b16 %v1875
    %v1908 = vunpack.c.l.b16 %v1876
    %v1909 = vunpack.c.l.b16 %v1877
    %v1910 = vunpack.c.l.b16 %v1878
    %v1911 = vunpack.c.l.b16 %v1879
    %v1912 = vunpack.c.l.b16 %v1880
    %v1913 = vunpack.c.l.b16 %v1881
    %v1914 = vunpack.c.l.b16 %v1882
    %v1915 = vunpack.c.l.b16 %v1883
    %v1916 = vunpack.c.l.b16 %v1884
    %v1917 = vunpack.c.l.b16 %v1885
    %v1918 = vunpack.c.l.b16 %v1886
    %v1919 = vunpack.c.l.b16 %v1887
    %v1920 = vpack.c.b16 %v1905, %v1904
    %v1921 = vpack.c.b16 %v1907, %v1906
    %v1922 = vpack.c.b16 %v1909, %v1908
    %v1923 = vpack.c.b16 %v1911, %v1910
    %v1924 = vpack.c.b16 %v1913, %v1912
    %v1925 = vpack.c.b16 %v1915, %v1914
    %v1926 = vpack.c.b16 %v1917, %v1916
    %v1927 = vpack.c.b16 %v1919, %v1918
    %1936 = vmatpush.bf16.msra.mxu0 %v1927
    %1937 = vmatpush.bf16.msra.mxu0 %v1926
    %1938 = vmatpush.bf16.msra.mxu0 %v1925
    %1939 = vmatpush.bf16.msra.mxu0 %v1924
    %1940 = vmatpush.bf16.msra.mxu0 %v1923
    %1941 = vmatpush.bf16.msra.mxu0 %v1922
    %1942 = vmatpush.bf16.msra.mxu0 %v1921
    %1943 = vmatpush.bf16.msra.mxu0 %v1920
    %1944 = vmatmul.bf16.gmra.mxu0 %v1851
    %v1945 = vpop.f32.mrf.mxu0
    %v1946 = vadd.f32 0.0, %v1945
    %v1947 = vpop.f32.mrf.mxu0
    %1948 = vdwg.mxu0
    %v1965 = vunpack.c.l.b16 %v1855
    %v1966 = vunpack.c.l.b16 %v1856
    %v1967 = vunpack.c.l.b16 %v1857
    %v1968 = vunpack.c.l.b16 %v1858
    %v1969 = vunpack.c.l.b16 %v1859
    %v1970 = vunpack.c.l.b16 %v1860
    %v1971 = vunpack.c.l.b16 %v1861
    %v1972 = vunpack.c.l.b16 %v1862
    %v1973 = vunpack.c.l.b16 %v1863
    %v1974 = vunpack.c.l.b16 %v1864
    %v1975 = vunpack.c.l.b16 %v1865
    %v1976 = vunpack.c.l.b16 %v1866
    %v1977 = vunpack.c.l.b16 %v1867
    %v1978 = vunpack.c.l.b16 %v1868
    %v1979 = vunpack.c.l.b16 %v1869
    %v1980 = vunpack.c.l.b16 %v1870
    %v1981 = vpack.c.b16 %v1966, %v1965
    %v1982 = vpack.c.b16 %v1968, %v1967
    %v1983 = vpack.c.b16 %v1970, %v1969
    %v1984 = vpack.c.b16 %v1972, %v1971
    %v1985 = vpack.c.b16 %v1974, %v1973
    %v1986 = vpack.c.b16 %v1976, %v1975
    %v1987 = vpack.c.b16 %v1978, %v1977
    %v1988 = vpack.c.b16 %v1980, %v1979
    %1997 = vmatpush.bf16.msra.mxu0 %v1988
    %1998 = vmatpush.bf16.msra.mxu0 %v1987
    %1999 = vmatpush.bf16.msra.mxu0 %v1986
    %2000 = vmatpush.bf16.msra.mxu0 %v1985
    %2001 = vmatpush.bf16.msra.mxu0 %v1984
    %2002 = vmatpush.bf16.msra.mxu0 %v1983
    %2003 = vmatpush.bf16.msra.mxu0 %v1982
    %2004 = vmatpush.bf16.msra.mxu0 %v1981
    %2005 = vmatmul.bf16.gmra.mxu0 %v1850
    %v2006 = vpop.f32.mrf.mxu0
    %v2007 = vadd.f32 %v1946, %v2006
    %v2008 = vpop.f32.mrf.mxu0
    %2009 = vdwg.mxu0
    %s2010 = scalar_lea.vmem [#allocation7], 128
    %v2011 = vld [vmem:[%s2010] sm:$0xf]
    %v2012 = vld [vmem:[%s2010 + $0x4] sm:$0xf]
    %v2013 = vld [vmem:[%s2010 + $0x8] sm:$0xf]
    %v2014 = vld [vmem:[%s2010 + $0xc] sm:$0xf]
    %v2015 = vld [vmem:[%s2010 + $0x10] sm:$0xf]
    %v2016 = vld [vmem:[%s2010 + $0x14] sm:$0xf]
    %v2017 = vld [vmem:[%s2010 + $0x18] sm:$0xf]
    %v2018 = vld [vmem:[%s2010 + $0x1c] sm:$0xf]
    %v2019 = vld [vmem:[%s2010 + $0x20] sm:$0xf]
    %v2020 = vld [vmem:[%s2010 + $0x24] sm:$0xf]
    %v2021 = vld [vmem:[%s2010 + $0x28] sm:$0xf]
    %v2022 = vld [vmem:[%s2010 + $0x2c] sm:$0xf]
    %v2023 = vld [vmem:[%s2010 + $0x30] sm:$0xf]
    %v2024 = vld [vmem:[%s2010 + $0x34] sm:$0xf]
    %v2025 = vld [vmem:[%s2010 + $0x38] sm:$0xf]
    %v2026 = vld [vmem:[%s2010 + $0x3c] sm:$0xf]
    %v2043 = vunpack.c.l.b16 %v2011
    %v2044 = vunpack.c.l.b16 %v2012
    %v2045 = vunpack.c.l.b16 %v2013
    %v2046 = vunpack.c.l.b16 %v2014
    %v2047 = vunpack.c.l.b16 %v2015
    %v2048 = vunpack.c.l.b16 %v2016
    %v2049 = vunpack.c.l.b16 %v2017
    %v2050 = vunpack.c.l.b16 %v2018
    %v2051 = vunpack.c.l.b16 %v2019
    %v2052 = vunpack.c.l.b16 %v2020
    %v2053 = vunpack.c.l.b16 %v2021
    %v2054 = vunpack.c.l.b16 %v2022
    %v2055 = vunpack.c.l.b16 %v2023
    %v2056 = vunpack.c.l.b16 %v2024
    %v2057 = vunpack.c.l.b16 %v2025
    %v2058 = vunpack.c.l.b16 %v2026
    %v2059 = vpack.c.b16 %v2044, %v2043
    %v2060 = vpack.c.b16 %v2046, %v2045
    %v2061 = vpack.c.b16 %v2048, %v2047
    %v2062 = vpack.c.b16 %v2050, %v2049
    %v2063 = vpack.c.b16 %v2052, %v2051
    %v2064 = vpack.c.b16 %v2054, %v2053
    %v2065 = vpack.c.b16 %v2056, %v2055
    %v2066 = vpack.c.b16 %v2058, %v2057
    %2075 = vmatpush.bf16.msra.mxu0 %v2066
    %2076 = vmatpush.bf16.msra.mxu0 %v2065
    %2077 = vmatpush.bf16.msra.mxu0 %v2064
    %2078 = vmatpush.bf16.msra.mxu0 %v2063
    %2079 = vmatpush.bf16.msra.mxu0 %v2062
    %2080 = vmatpush.bf16.msra.mxu0 %v2061
    %2081 = vmatpush.bf16.msra.mxu0 %v2060
    %2082 = vmatpush.bf16.msra.mxu0 %v2059
    %2083 = vmatmul.bf16.gmra.mxu0 %v1852
    %v2084 = vpop.f32.mrf.mxu0
    %v2085 = vadd.f32 0.0, %v2084
    %v2086 = vpop.f32.mrf.mxu0
    %2087 = vdwg.mxu0
    %v2088 = vadd.f32 %v2007, %v2085
    %s2089 = scalar_lea.vmem [#allocation7], 192
    %v2090 = vld [vmem:[%s2089] sm:$0xf]
    %v2091 = vld [vmem:[%s2089 + $0x4] sm:$0xf]
    %v2092 = vld [vmem:[%s2089 + $0x8] sm:$0xf]
    %v2093 = vld [vmem:[%s2089 + $0xc] sm:$0xf]
    %v2094 = vld [vmem:[%s2089 + $0x10] sm:$0xf]
    %v2095 = vld [vmem:[%s2089 + $0x14] sm:$0xf]
    %v2096 = vld [vmem:[%s2089 + $0x18] sm:$0xf]
    %v2097 = vld [vmem:[%s2089 + $0x1c] sm:$0xf]
    %v2098 = vld [vmem:[%s2089 + $0x20] sm:$0xf]
    %v2099 = vld [vmem:[%s2089 + $0x24] sm:$0xf]
    %v2100 = vld [vmem:[%s2089 + $0x28] sm:$0xf]
    %v2101 = vld [vmem:[%s2089 + $0x2c] sm:$0xf]
    %v2102 = vld [vmem:[%s2089 + $0x30] sm:$0xf]
    %v2103 = vld [vmem:[%s2089 + $0x34] sm:$0xf]
    %v2104 = vld [vmem:[%s2089 + $0x38] sm:$0xf]
    %v2105 = vld [vmem:[%s2089 + $0x3c] sm:$0xf]
    %v2122 = vunpack.c.l.b16 %v2090
    %v2123 = vunpack.c.l.b16 %v2091
    %v2124 = vunpack.c.l.b16 %v2092
    %v2125 = vunpack.c.l.b16 %v2093
    %v2126 = vunpack.c.l.b16 %v2094
    %v2127 = vunpack.c.l.b16 %v2095
    %v2128 = vunpack.c.l.b16 %v2096
    %v2129 = vunpack.c.l.b16 %v2097
    %v2130 = vunpack.c.l.b16 %v2098
    %v2131 = vunpack.c.l.b16 %v2099
    %v2132 = vunpack.c.l.b16 %v2100
    %v2133 = vunpack.c.l.b16 %v2101
    %v2134 = vunpack.c.l.b16 %v2102
    %v2135 = vunpack.c.l.b16 %v2103
    %v2136 = vunpack.c.l.b16 %v2104
    %v2137 = vunpack.c.l.b16 %v2105
    %v2138 = vpack.c.b16 %v2123, %v2122
    %v2139 = vpack.c.b16 %v2125, %v2124
    %v2140 = vpack.c.b16 %v2127, %v2126
    %v2141 = vpack.c.b16 %v2129, %v2128
    %v2142 = vpack.c.b16 %v2131, %v2130
    %v2143 = vpack.c.b16 %v2133, %v2132
    %v2144 = vpack.c.b16 %v2135, %v2134
    %v2145 = vpack.c.b16 %v2137, %v2136
    %2154 = vmatpush.bf16.msra.mxu0 %v2145
    %2155 = vmatpush.bf16.msra.mxu0 %v2144
    %2156 = vmatpush.bf16.msra.mxu0 %v2143
    %2157 = vmatpush.bf16.msra.mxu0 %v2142
    %2158 = vmatpush.bf16.msra.mxu0 %v2141
    %2159 = vmatpush.bf16.msra.mxu0 %v2140
    %2160 = vmatpush.bf16.msra.mxu0 %v2139
    %2161 = vmatpush.bf16.msra.mxu0 %v2138
    %2162 = vmatmul.bf16.gmra.mxu0 %v1853
    %v2163 = vpop.f32.mrf.mxu0
    %v2164 = vadd.f32 0.0, %v2163
    %v2165 = vpop.f32.mrf.mxu0
    %2166 = vdwg.mxu0
    %v2167 = vadd.f32 %v2088, %v2164
    %s2168 = scalar_lea.vmem [#allocation7], 256
    %v2169 = vld [vmem:[%s2168] sm:$0xf]
    %v2170 = vld [vmem:[%s2168 + $0x4] sm:$0xf]
    %v2171 = vld [vmem:[%s2168 + $0x8] sm:$0xf]
    %v2172 = vld [vmem:[%s2168 + $0xc] sm:$0xf]
    %v2173 = vld [vmem:[%s2168 + $0x10] sm:$0xf]
    %v2174 = vld [vmem:[%s2168 + $0x14] sm:$0xf]
    %v2175 = vld [vmem:[%s2168 + $0x18] sm:$0xf]
    %v2176 = vld [vmem:[%s2168 + $0x1c] sm:$0xf]
    %v2177 = vld [vmem:[%s2168 + $0x20] sm:$0xf]
    %v2178 = vld [vmem:[%s2168 + $0x24] sm:$0xf]
    %v2179 = vld [vmem:[%s2168 + $0x28] sm:$0xf]
    %v2180 = vld [vmem:[%s2168 + $0x2c] sm:$0xf]
    %v2181 = vld [vmem:[%s2168 + $0x30] sm:$0xf]
    %v2182 = vld [vmem:[%s2168 + $0x34] sm:$0xf]
    %v2183 = vld [vmem:[%s2168 + $0x38] sm:$0xf]
    %v2184 = vld [vmem:[%s2168 + $0x3c] sm:$0xf]
    %v2201 = vunpack.c.l.b16 %v2169
    %v2202 = vunpack.c.l.b16 %v2170
    %v2203 = vunpack.c.l.b16 %v2171
    %v2204 = vunpack.c.l.b16 %v2172
    %v2205 = vunpack.c.l.b16 %v2173
    %v2206 = vunpack.c.l.b16 %v2174
    %v2207 = vunpack.c.l.b16 %v2175
    %v2208 = vunpack.c.l.b16 %v2176
    %v2209 = vunpack.c.l.b16 %v2177
    %v2210 = vunpack.c.l.b16 %v2178
    %v2211 = vunpack.c.l.b16 %v2179
    %v2212 = vunpack.c.l.b16 %v2180
    %v2213 = vunpack.c.l.b16 %v2181
    %v2214 = vunpack.c.l.b16 %v2182
    %v2215 = vunpack.c.l.b16 %v2183
    %v2216 = vunpack.c.l.b16 %v2184
    %v2217 = vpack.c.b16 %v2202, %v2201
    %v2218 = vpack.c.b16 %v2204, %v2203
    %v2219 = vpack.c.b16 %v2206, %v2205
    %v2220 = vpack.c.b16 %v2208, %v2207
    %v2221 = vpack.c.b16 %v2210, %v2209
    %v2222 = vpack.c.b16 %v2212, %v2211
    %v2223 = vpack.c.b16 %v2214, %v2213
    %v2224 = vpack.c.b16 %v2216, %v2215
    %2233 = vmatpush.bf16.msra.mxu0 %v2224
    %2234 = vmatpush.bf16.msra.mxu0 %v2223
    %2235 = vmatpush.bf16.msra.mxu0 %v2222
    %2236 = vmatpush.bf16.msra.mxu0 %v2221
    %2237 = vmatpush.bf16.msra.mxu0 %v2220
    %2238 = vmatpush.bf16.msra.mxu0 %v2219
    %2239 = vmatpush.bf16.msra.mxu0 %v2218
    %2240 = vmatpush.bf16.msra.mxu0 %v2217
    %2241 = vmatmul.bf16.gmra.mxu0 %v1854
    %v2242 = vpop.f32.mrf.mxu0
    %v2243 = vadd.f32 0.0, %v2242
    %v2244 = vpop.f32.mrf.mxu0
    %2245 = vdwg.mxu0
    %v2246 = vadd.f32 %v2167, %v2243
    %v2247 = vld [vmem:[%s10] sm:$0x1]
    %v2249 = vperm.slane %v2247, 0
    %v2251 = vadd.f32 %v2246, %v2249
    %v2252 = vmax.f32 %v2251, 0.0
    %v2253 = vpack.c.bf16 %v2252, %v2252
    %v2254 = vld [vmem:[%s11] sm:$0xf]
    %v2255 = vld [vmem:[%s11 + $0x4] sm:$0xf]
    %v2256 = vld [vmem:[%s11 + $0x8] sm:$0xf]
    %v2257 = vld [vmem:[%s11 + $0xc] sm:$0xf]
    %v2258 = vld [vmem:[%s11 + $0x10] sm:$0xf]
    %v2259 = vld [vmem:[%s11 + $0x14] sm:$0xf]
    %v2260 = vld [vmem:[%s11 + $0x18] sm:$0xf]
    %v2261 = vld [vmem:[%s11 + $0x1c] sm:$0xf]
    %v2262 = vld [vmem:[%s11 + $0x20] sm:$0xf]
    %v2263 = vld [vmem:[%s11 + $0x24] sm:$0xf]
    %v2264 = vld [vmem:[%s11 + $0x28] sm:$0xf]
    %v2265 = vld [vmem:[%s11 + $0x2c] sm:$0xf]
    %v2266 = vld [vmem:[%s11 + $0x30] sm:$0xf]
    %v2267 = vld [vmem:[%s11 + $0x34] sm:$0xf]
    %v2268 = vld [vmem:[%s11 + $0x38] sm:$0xf]
    %v2269 = vld [vmem:[%s11 + $0x3c] sm:$0xf]
    %v2270 = vld [vmem:[%s12] sm:$0x1]
    %v2272 = vperm.slane %v2270, 0
    %v2290 = vunpack.c.l.b16 %v2254
    %v2291 = vunpack.c.l.b16 %v2255
    %v2292 = vunpack.c.l.b16 %v2256
    %v2293 = vunpack.c.l.b16 %v2257
    %v2294 = vunpack.c.l.b16 %v2258
    %v2295 = vunpack.c.l.b16 %v2259
    %v2296 = vunpack.c.l.b16 %v2260
    %v2297 = vunpack.c.l.b16 %v2261
    %v2298 = vunpack.c.l.b16 %v2262
    %v2299 = vunpack.c.l.b16 %v2263
    %v2300 = vunpack.c.l.b16 %v2264
    %v2301 = vunpack.c.l.b16 %v2265
    %v2302 = vunpack.c.l.b16 %v2266
    %v2303 = vunpack.c.l.b16 %v2267
    %v2304 = vunpack.c.l.b16 %v2268
    %v2305 = vunpack.c.l.b16 %v2269
    %v2306 = vpack.c.b16 %v2291, %v2290
    %v2307 = vpack.c.b16 %v2293, %v2292
    %v2308 = vpack.c.b16 %v2295, %v2294
    %v2309 = vpack.c.b16 %v2297, %v2296
    %v2310 = vpack.c.b16 %v2299, %v2298
    %v2311 = vpack.c.b16 %v2301, %v2300
    %v2312 = vpack.c.b16 %v2303, %v2302
    %v2313 = vpack.c.b16 %v2305, %v2304
    %2322 = vmatpush.bf16.msra.mxu0 %v2313
    %2323 = vmatpush.bf16.msra.mxu0 %v2312
    %2324 = vmatpush.bf16.msra.mxu0 %v2311
    %2325 = vmatpush.bf16.msra.mxu0 %v2310
    %2326 = vmatpush.bf16.msra.mxu0 %v2309
    %2327 = vmatpush.bf16.msra.mxu0 %v2308
    %2328 = vmatpush.bf16.msra.mxu0 %v2307
    %2329 = vmatpush.bf16.msra.mxu0 %v2306
    %2330 = vmatmul.bf16.gmra.mxu0 %v2253
    %v2331 = vpop.f32.mrf.mxu0
    %v2332 = vadd.f32 %v2272, %v2331
    %v2333 = vpop.f32.mrf.mxu0
    %2334 = vdwg.mxu0
    %v2335 = vmax.f32 %v2332, 0.0
    %v2336 = vpack.c.bf16 %v2335, %v2335
    %v2337 = vld [vmem:[%s13] sm:$0xf]
    %v2338 = vld [vmem:[%s13 + $0x4] sm:$0xf]
    %v2339 = vld [vmem:[%s13 + $0x8] sm:$0xf]
    %v2340 = vld [vmem:[%s13 + $0xc] sm:$0xf]
    %v2341 = vld [vmem:[%s13 + $0x10] sm:$0xf]
    %v2342 = vld [vmem:[%s13 + $0x14] sm:$0xf]
    %v2343 = vld [vmem:[%s13 + $0x18] sm:$0xf]
    %v2344 = vld [vmem:[%s13 + $0x1c] sm:$0xf]
    %v2345 = vld [vmem:[%s13 + $0x20] sm:$0xf]
    %v2346 = vld [vmem:[%s13 + $0x24] sm:$0xf]
    %v2347 = vld [vmem:[%s13 + $0x28] sm:$0xf]
    %v2348 = vld [vmem:[%s13 + $0x2c] sm:$0xf]
    %v2349 = vld [vmem:[%s13 + $0x30] sm:$0xf]
    %v2350 = vld [vmem:[%s13 + $0x34] sm:$0xf]
    %v2351 = vld [vmem:[%s13 + $0x38] sm:$0xf]
    %v2352 = vld [vmem:[%s13 + $0x3c] sm:$0xf]
    %v2353 = vld [vmem:[%s14] sm:$0x1]
    %v2355 = vperm.slane %v2353, 0
    %v2373 = vunpack.c.l.b16 %v2337
    %v2374 = vunpack.c.l.b16 %v2338
    %v2375 = vunpack.c.l.b16 %v2339
    %v2376 = vunpack.c.l.b16 %v2340
    %v2377 = vunpack.c.l.b16 %v2341
    %v2378 = vunpack.c.l.b16 %v2342
    %v2379 = vunpack.c.l.b16 %v2343
    %v2380 = vunpack.c.l.b16 %v2344
    %v2381 = vunpack.c.l.b16 %v2345
    %v2382 = vunpack.c.l.b16 %v2346
    %v2383 = vunpack.c.l.b16 %v2347
    %v2384 = vunpack.c.l.b16 %v2348
    %v2385 = vunpack.c.l.b16 %v2349
    %v2386 = vunpack.c.l.b16 %v2350
    %v2387 = vunpack.c.l.b16 %v2351
    %v2388 = vunpack.c.l.b16 %v2352
    %v2389 = vpack.c.b16 %v2374, %v2373
    %v2390 = vpack.c.b16 %v2376, %v2375
    %v2391 = vpack.c.b16 %v2378, %v2377
    %v2392 = vpack.c.b16 %v2380, %v2379
    %v2393 = vpack.c.b16 %v2382, %v2381
    %v2394 = vpack.c.b16 %v2384, %v2383
    %v2395 = vpack.c.b16 %v2386, %v2385
    %v2396 = vpack.c.b16 %v2388, %v2387
    %2405 = vmatpush.bf16.msra.mxu0 %v2396
    %2406 = vmatpush.bf16.msra.mxu0 %v2395
    %2407 = vmatpush.bf16.msra.mxu0 %v2394
    %2408 = vmatpush.bf16.msra.mxu0 %v2393
    %2409 = vmatpush.bf16.msra.mxu0 %v2392
    %2410 = vmatpush.bf16.msra.mxu0 %v2391
    %2411 = vmatpush.bf16.msra.mxu0 %v2390
    %2412 = vmatpush.bf16.msra.mxu0 %v2389
    %2413 = vmatmul.bf16.gmra.mxu0 %v2336
    %v2414 = vpop.f32.mrf.mxu0
    %v2415 = vadd.f32 %v2355, %v2414
    %v2416 = vpop.f32.mrf.mxu0
    %2417 = vdwg.mxu0
    %2418 = vst [vmem:[%s15] sm:$0xff] %v2415
    // Predicated region
    $region74: #{lenet_forward.1} parent=1 // pred_check
      _
    $region75: #{lenet_forward.1} parent=1 // pred_check_branch
      %2420 = sbr.rel (0) target = $region77
    $region76: #{lenet_forward.1} parent=1 // pred_region
      _
    $region77: #{lenet_forward.1} parent=1 // pred_fallthru
      _
    // Predicated region
    $region78: #{lenet_forward.1} parent=1 // pred_check
      _
    $region79: #{lenet_forward.1} parent=1 // pred_check_branch
      %2422 = sbr.rel (0) target = $region81
    $region80: #{lenet_forward.1} parent=1 // pred_region
      _
    $region81: #{lenet_forward.1} parent=1 // pred_fallthru
      _
    %2423 = vsyncpa [#allocation4], 1
    %2424 = vsyncpa [#allocation6], 1

</llo_original>
